<compile_context>
chip_gen: v7x
topology: tpu7x:2x2x1
jax: 0.10.0
libtpu: 0.0.40
codegen_flags: <defaults>
</compile_context>

<pallas_src>
import jax
import jax.numpy as jnp
from jax.experimental import pallas as pl
from jax.experimental.pallas import tpu as pltpu

_EPS = 1e-5


def _pick_spatial_tile(S):
    """Largest lane-aligned tile that divides S (falls back to full S)."""
    for ts in (2048, 1024, 512, 256, 128):
        if S % ts == 0:
            return ts
    return S  # full-extent block (still legal: block dim == full array dim)


# ---------------------------------------------------------------------------
# Kernel 1: 1x1x1 projections (MXU, bf16 in / f32 accum) + BN partial stats
# ---------------------------------------------------------------------------

def _proj_stats_kernel(g_ref, x_ref, wg_ref, bg_ref, wx_ref, bx_ref,
                       yg_ref, yx_ref, st_ref):
    g = g_ref[0]                                   # [F_g, ts]  bf16
    x = x_ref[0]                                   # [F_l, ts]  bf16
    yg = jnp.dot(wg_ref[...], g, preferred_element_type=jnp.float32) + bg_ref[...]
    yx = jnp.dot(wx_ref[...], x, preferred_element_type=jnp.float32) + bx_ref[...]
    yg_ref[0] = yg.astype(yg_ref.dtype)
    yx_ref[0] = yx.astype(yx_ref.dtype)
    # Per-tile partial sums for train-mode BatchNorm batch statistics
    # (computed from the exact f32 accumulator, XLU reduction rides for free).
    st_ref[0] = jnp.concatenate(
        [jnp.sum(yg, axis=1, keepdims=True),
         jnp.sum(yg * yg, axis=1, keepdims=True),
         jnp.sum(yx, axis=1, keepdims=True),
         jnp.sum(yx * yx, axis=1, keepdims=True)], axis=1)      # [F_int, 4]


# ---------------------------------------------------------------------------
# Kernel 2: BN + ReLU + psi 1x1x1 conv (VPU dot over F_int) + psi BN stats
# ---------------------------------------------------------------------------

def _psi_pre_kernel(yg_ref, yx_ref, gsc_ref, xsc_ref, sh_ref, wpsi_ref, bpsi_ref,
                    p_ref, ps_ref):
    yg = yg_ref[0].astype(jnp.float32)             # [F_int, ts]
    yx = yx_ref[0].astype(jnp.float32)
    # BN(yg) + BN(yx) folded into per-channel scale / combined shift, then ReLU
    a = jnp.maximum(yg * gsc_ref[...] + yx * xsc_ref[...] + sh_ref[...], 0.0)
    # psi conv (F_int -> 1): VPU multiply + sublane reduce; output stays
    # lane-dense ([1, ts]) instead of a [rows, 1] masked-store matmul.
    p = jnp.sum(a * wpsi_ref[...], axis=0, keepdims=True) + bpsi_ref[...]   # [1, ts]
    p_ref[0] = p
    ps_ref[0] = jnp.concatenate(
        [jnp.sum(p, axis=1, keepdims=True),
         jnp.sum(p * p, axis=1, keepdims=True)], axis=1)        # [1, 2]


# ---------------------------------------------------------------------------
# Kernel 3: out = x * sigmoid(BN(p))
# ---------------------------------------------------------------------------

def _gate_kernel(x_ref, p_ref, paff_ref, o_ref):
    psi = jax.nn.sigmoid(p_ref[0] * paff_ref[:, 0:1] + paff_ref[:, 1:2])    # [1, ts]
    o_ref[0] = x_ref[0] * psi                       # broadcast over channels


# ---------------------------------------------------------------------------
# Forward pass
# ---------------------------------------------------------------------------

def attention_block_forward(params, g, x, eps=_EPS):
    """g: [B, F_g, D, H, W], x: [B, F_l, D, H, W] -> [B, F_l, D, H, W]."""
    B, F_g, D, H, W = g.shape
    F_l = x.shape[1]
    F_int = params["wg"].shape[0]
    S = D * H * W
    ts = _pick_spatial_tile(S)
    nS = S // ts
    n = B * S

    g3 = g.reshape(B, F_g, S)
    x3 = x.reshape(B, F_l, S)

    # bf16 operands for the MXU (accumulation stays f32 inside the kernel)
    g_bf = g3.astype(jnp.bfloat16)
    x_bf = x3.astype(jnp.bfloat16)
    wg = params["wg"].astype(jnp.bfloat16)
    wx = params["wx"].astype(jnp.bfloat16)
    bg = params["bg"].reshape(F_int, 1).astype(jnp.float32)
    bx = params["bx"].reshape(F_int, 1).astype(jnp.float32)

    parallel2 = pltpu.CompilerParams(dimension_semantics=("parallel", "parallel"))

    # ---- K1: projections + BN partial statistics ----
    yg, yx, stats = pl.pallas_call(
        _proj_stats_kernel,
        out_shape=(jax.ShapeDtypeStruct((B, F_int, S), jnp.bfloat16),
                   jax.ShapeDtypeStruct((B, F_int, S), jnp.bfloat16),
                   jax.ShapeDtypeStruct((B * nS, F_int, 4), jnp.float32)),
        grid=(B, nS),
        in_specs=[
            pl.BlockSpec((1, F_g, ts), lambda b, j: (b, 0, j)),
            pl.BlockSpec((1, F_l, ts), lambda b, j: (b, 0, j)),
            pl.BlockSpec((F_int, F_g), lambda b, j: (0, 0)),
            pl.BlockSpec((F_int, 1), lambda b, j: (0, 0)),
            pl.BlockSpec((F_int, F_l), lambda b, j: (0, 0)),
            pl.BlockSpec((F_int, 1), lambda b, j: (0, 0)),
        ],
        out_specs=(
            pl.BlockSpec((1, F_int, ts), lambda b, j: (b, 0, j)),
            pl.BlockSpec((1, F_int, ts), lambda b, j: (b, 0, j)),
            pl.BlockSpec((1, F_int, 4), lambda b, j: (b * nS + j, 0, 0)),
        ),
        compiler_params=parallel2,
    )(g_bf, x_bf, wg, bg, wx, bx)

    # ---- finalize train-mode BN statistics (biased variance), O(F_int) glue ----
    st = jnp.sum(stats, axis=0)                     # [F_int, 4]
    g_mean = st[:, 0] / n
    g_var = jnp.maximum(st[:, 1] / n - g_mean * g_mean, 0.0)
    x_mean = st[:, 2] / n
    x_var = jnp.maximum(st[:, 3] / n - x_mean * x_mean, 0.0)
    gsc = params["bn_g_gamma"] * jax.lax.rsqrt(g_var + eps)
    xsc = params["bn_x_gamma"] * jax.lax.rsqrt(x_var + eps)
    shift = (params["bn_g_beta"] - g_mean * gsc) + (params["bn_x_beta"] - x_mean * xsc)

    gsc = gsc.reshape(F_int, 1).astype(jnp.float32)
    xsc = xsc.reshape(F_int, 1).astype(jnp.float32)
    shift = shift.reshape(F_int, 1).astype(jnp.float32)
    wpsi = params["wpsi"].reshape(F_int, 1).astype(jnp.float32)
    bpsi = params["bpsi"].reshape(1, 1).astype(jnp.float32)

    # ---- K2: BN + ReLU + psi reduction + psi BN partial stats ----
    p_pre, psum = pl.pallas_call(
        _psi_pre_kernel,
        out_shape=(jax.ShapeDtypeStruct((B, 1, S), jnp.float32),
                   jax.ShapeDtypeStruct((B * nS, 1, 2), jnp.float32)),
        grid=(B, nS),
        in_specs=[
            pl.BlockSpec((1, F_int, ts), lambda b, j: (b, 0, j)),
            pl.BlockSpec((1, F_int, ts), lambda b, j: (b, 0, j)),
            pl.BlockSpec((F_int, 1), lambda b, j: (0, 0)),
            pl.BlockSpec((F_int, 1), lambda b, j: (0, 0)),
            pl.BlockSpec((F_int, 1), lambda b, j: (0, 0)),
            pl.BlockSpec((F_int, 1), lambda b, j: (0, 0)),
            pl.BlockSpec((1, 1), lambda b, j: (0, 0)),
        ],
        out_specs=(
            pl.BlockSpec((1, 1, ts), lambda b, j: (b, 0, j)),
            pl.BlockSpec((1, 1, 2), lambda b, j: (b * nS + j, 0, 0)),
        ),
        compiler_params=parallel2,
    )(yg, yx, gsc, xsc, shift, wpsi, bpsi)

    # psi BatchNorm (single channel) statistics
    ps = jnp.sum(psum, axis=0)                      # [1, 2]
    p_mean = ps[0, 0] / n
    p_var = jnp.maximum(ps[0, 1] / n - p_mean * p_mean, 0.0)
    psc = params["bn_p_gamma"][0] * jax.lax.rsqrt(p_var + eps)
    psh = params["bn_p_beta"][0] - p_mean * psc
    paff = jnp.stack([psc, psh]).reshape(1, 2).astype(jnp.float32)

    # ---- K3: gate ----
    out3 = pl.pallas_call(
        _gate_kernel,
        out_shape=jax.ShapeDtypeStruct((B, F_l, S), jnp.float32),
        grid=(B, nS),
        in_specs=[
            pl.BlockSpec((1, F_l, ts), lambda b, j: (b, 0, j)),
            pl.BlockSpec((1, 1, ts), lambda b, j: (b, 0, j)),
            pl.BlockSpec((1, 2), lambda b, j: (0, 0)),
        ],
        out_specs=pl.BlockSpec((1, F_l, ts), lambda b, j: (b, 0, j)),
        compiler_params=parallel2,
    )(x3.astype(jnp.float32), p_pre, paff)

    return out3.reshape(B, F_l, D, H, W)


# ---------------------------------------------------------------------------
# Parameters (PyTorch default init: U(-1/sqrt(fan_in), 1/sqrt(fan_in)); BN 1/0)
# ---------------------------------------------------------------------------

def init_params(key, f_g, f_l, f_int):
    ks = jax.random.split(key, 6)

    def u(k, shape, fan_in):
        b = 1.0 / float(fan_in) ** 0.5
        return jax.random.uniform(k, shape, jnp.float32, -b, b)

    return {
        "wg": u(ks[0], (f_int, f_g), f_g), "bg": u(ks[1], (f_int,), f_g),
        "wx": u(ks[2], (f_int, f_l), f_l), "bx": u(ks[3], (f_int,), f_l),
        "wpsi": u(ks[4], (1, f_int), f_int), "bpsi": u(ks[5], (1,), f_int),
        "bn_g_gamma": jnp.ones((f_int,), jnp.float32),
        "bn_g_beta": jnp.zeros((f_int,), jnp.float32),
        "bn_x_gamma": jnp.ones((f_int,), jnp.float32),
        "bn_x_beta": jnp.zeros((f_int,), jnp.float32),
        "bn_p_gamma": jnp.ones((1,), jnp.float32),
        "bn_p_beta": jnp.zeros((1,), jnp.float32),
    }


# ---------------------------------------------------------------------------
# Pure-JAX reference (train-mode BatchNorm, biased variance) for validation
# ---------------------------------------------------------------------------

def attention_block_reference(params, g, x, eps=_EPS):
    B, F_g, D, H, W = g.shape
    S = D * H * W
    g3 = g.reshape(B, F_g, S).astype(jnp.float32)
    x3 = x.reshape(B, -1, S).astype(jnp.float32)

    def conv1(w, b, t):
        return jnp.einsum("oc,bcs->bos", w, t) + b.reshape(1, -1, 1)

    def bn(t, gamma, beta):
        mean = t.mean(axis=(0, 2), keepdims=True)
        var = t.var(axis=(0, 2), keepdims=True)
        return ((t - mean) * jax.lax.rsqrt(var + eps)
                * gamma.reshape(1, -1, 1) + beta.reshape(1, -1, 1))

    g1 = bn(conv1(params["wg"], params["bg"], g3),
            params["bn_g_gamma"], params["bn_g_beta"])
    x1 = bn(conv1(params["wx"], params["bx"], x3),
            params["bn_x_gamma"], params["bn_x_beta"])
    a = jax.nn.relu(g1 + x1)
    p = bn(conv1(params["wpsi"], params["bpsi"], a),
           params["bn_p_gamma"], params["bn_p_beta"])
    psi = jax.nn.sigmoid(p)
    return (x3 * psi).reshape(x.shape)


# ---------------------------------------------------------------------------

if __name__ == "__main__":
    key = jax.random.PRNGKey(0)
    kg, kx, kp = jax.random.split(key, 3)

    B, F_g, F_l, F_int = 2, 16, 16, 8
    D = H = W = 8                                   # S = 512 (multiple of 128)
    g = jax.random.normal(kg, (B, F_g, D, H, W), jnp.float32)
    x = jax.random.normal(kx, (B, F_l, D, H, W), jnp.float32)
    params = init_params(kp, F_g, F_l, F_int)

    fwd = jax.jit(attention_block_forward)
    out = fwd(params, g, x)
    jax.block_until_ready(out)

    assert out.shape == (B, F_l, D, H, W)
    assert bool(jnp.all(jnp.isfinite(out)))

    # Loose tolerance: kernel uses bf16 MXU operands / bf16 intermediates.
    ref = attention_block_reference(params, g, x)
    max_err = float(jnp.max(jnp.abs(out - ref)))
    assert max_err < 0.2, f"mismatch vs reference: max abs err = {max_err}"

    print("KERNEL_OK")
</pallas_src>

<mosaic_0001>
module attributes {stable_mosaic.version = 11 : i64} {
  func.func @_proj_stats_kernel(%arg0: i32, %arg1: i32, %arg2: memref<1x16x512xbf16, #tpu.memory_space<vmem>>, %arg3: memref<1x16x512xbf16, #tpu.memory_space<vmem>>, %arg4: memref<8x16xbf16, #tpu.memory_space<vmem>>, %arg5: memref<8x1xf32, #tpu.memory_space<vmem>>, %arg6: memref<8x16xbf16, #tpu.memory_space<vmem>>, %arg7: memref<8x1xf32, #tpu.memory_space<vmem>>, %arg8: memref<1x8x512xbf16, #tpu.memory_space<vmem>>, %arg9: memref<1x8x512xbf16, #tpu.memory_space<vmem>>, %arg10: memref<1x8x4xf32, #tpu.memory_space<vmem>>) attributes {dimension_semantics = [#tpu.dimension_semantics<parallel>, #tpu.dimension_semantics<parallel>], iteration_bounds = array<i64: 2, 1>, scalar_prefetch = 0 : i64, scratch_operands = 0 : i64, tpu.core_type = #tpu.core_type<tc>, window_params = [{transform_indices = @transform_0, window_bounds = array<i64: 1, 16, 512>}, {transform_indices = @transform_1, window_bounds = array<i64: 1, 16, 512>}, {pipeline_mode = #tpu.pipeline_mode<synchronous>, transform_indices = @transform_2, window_bounds = array<i64: 8, 16>}, {pipeline_mode = #tpu.pipeline_mode<synchronous>, transform_indices = @transform_3, window_bounds = array<i64: 8, 1>}, {pipeline_mode = #tpu.pipeline_mode<synchronous>, transform_indices = @transform_4, window_bounds = array<i64: 8, 16>}, {pipeline_mode = #tpu.pipeline_mode<synchronous>, transform_indices = @transform_5, window_bounds = array<i64: 8, 1>}, {transform_indices = @transform_6, window_bounds = array<i64: 1, 8, 512>}, {transform_indices = @transform_7, window_bounds = array<i64: 1, 8, 512>}, {transform_indices = @transform_8, window_bounds = array<i64: 1, 8, 4>}]} {
    %c0 = arith.constant 0 : index
    %c0_0 = arith.constant 0 : index
    %c0_1 = arith.constant 0 : index
    %0 = vector.load %arg2[%c0, %c0_0, %c0_1] : memref<1x16x512xbf16, #tpu.memory_space<vmem>>, vector<1x16x512xbf16>
    %1 = vector.shape_cast %0 : vector<1x16x512xbf16> to vector<16x512xbf16>
    %c0_2 = arith.constant 0 : index
    %c0_3 = arith.constant 0 : index
    %c0_4 = arith.constant 0 : index
    %2 = vector.load %arg3[%c0_2, %c0_3, %c0_4] : memref<1x16x512xbf16, #tpu.memory_space<vmem>>, vector<1x16x512xbf16>
    %3 = vector.shape_cast %2 : vector<1x16x512xbf16> to vector<16x512xbf16>
    %c0_5 = arith.constant 0 : index
    %c0_6 = arith.constant 0 : index
    %4 = vector.load %arg4[%c0_5, %c0_6] : memref<8x16xbf16, #tpu.memory_space<vmem>>, vector<8x16xbf16>
    %cst = arith.constant dense<0.000000e+00> : vector<8x512xf32>
    %5 = tpu.matmul %4, %1, %cst {dimension_numbers = #tpu.dot_dimension_numbers<[1], [0], [0], [1], [0, 0, 1, 1], [], []>} : vector<8x16xbf16>, vector<16x512xbf16>, vector<8x512xf32> -> vector<8x512xf32>
    %c0_7 = arith.constant 0 : index
    %c0_8 = arith.constant 0 : index
    %6 = vector.load %arg5[%c0_7, %c0_8] : memref<8x1xf32, #tpu.memory_space<vmem>>, vector<8x1xf32>
    %7 = vector.broadcast %6 : vector<8x1xf32> to vector<8x512xf32>
    %8 = arith.addf %5, %7 : vector<8x512xf32>
    %c0_9 = arith.constant 0 : index
    %c0_10 = arith.constant 0 : index
    %9 = vector.load %arg6[%c0_9, %c0_10] : memref<8x16xbf16, #tpu.memory_space<vmem>>, vector<8x16xbf16>
    %cst_11 = arith.constant dense<0.000000e+00> : vector<8x512xf32>
    %10 = tpu.matmul %9, %3, %cst_11 {dimension_numbers = #tpu.dot_dimension_numbers<[1], [0], [0], [1], [0, 0, 1, 1], [], []>} : vector<8x16xbf16>, vector<16x512xbf16>, vector<8x512xf32> -> vector<8x512xf32>
    %c0_12 = arith.constant 0 : index
    %c0_13 = arith.constant 0 : index
    %11 = vector.load %arg7[%c0_12, %c0_13] : memref<8x1xf32, #tpu.memory_space<vmem>>, vector<8x1xf32>
    %12 = vector.broadcast %11 : vector<8x1xf32> to vector<8x512xf32>
    %13 = arith.addf %10, %12 : vector<8x512xf32>
    %14 = arith.truncf %8 : vector<8x512xf32> to vector<8x512xbf16>
    %c0_14 = arith.constant 0 : index
    %c0_15 = arith.constant 0 : index
    %c0_16 = arith.constant 0 : index
    %15 = vector.load %arg8[%c0_14, %c0_15, %c0_16] : memref<1x8x512xbf16, #tpu.memory_space<vmem>>, vector<1x8x512xbf16>
    %16 = vector.shape_cast %15 : vector<1x8x512xbf16> to vector<8x512xbf16>
    %17 = vector.shape_cast %14 : vector<8x512xbf16> to vector<1x8x512xbf16>
    tpu.vector_store %arg8[%c0_14, %c0_15, %c0_16], %17 {strides = array<i32>} : memref<1x8x512xbf16, #tpu.memory_space<vmem>>, vector<1x8x512xbf16>,
    %18 = arith.truncf %13 : vector<8x512xf32> to vector<8x512xbf16>
    %c0_17 = arith.constant 0 : index
    %c0_18 = arith.constant 0 : index
    %c0_19 = arith.constant 0 : index
    %19 = vector.load %arg9[%c0_17, %c0_18, %c0_19] : memref<1x8x512xbf16, #tpu.memory_space<vmem>>, vector<1x8x512xbf16>
    %20 = vector.shape_cast %19 : vector<1x8x512xbf16> to vector<8x512xbf16>
    %21 = vector.shape_cast %18 : vector<8x512xbf16> to vector<1x8x512xbf16>
    tpu.vector_store %arg9[%c0_17, %c0_18, %c0_19], %21 {strides = array<i32>} : memref<1x8x512xbf16, #tpu.memory_space<vmem>>, vector<1x8x512xbf16>,
    %cst_20 = arith.constant dense<0.000000e+00> : vector<8xf32>
    %22 = vector.multi_reduction <add>, %8, %cst_20 [1] : vector<8x512xf32> to vector<8xf32>
    %23 = vector.shape_cast %22 : vector<8xf32> to vector<8x1xf32>
    %24 = arith.mulf %8, %8 : vector<8x512xf32>
    %cst_21 = arith.constant dense<0.000000e+00> : vector<8xf32>
    %25 = vector.multi_reduction <add>, %24, %cst_21 [1] : vector<8x512xf32> to vector<8xf32>
    %26 = vector.shape_cast %25 : vector<8xf32> to vector<8x1xf32>
    %cst_22 = arith.constant dense<0.000000e+00> : vector<8xf32>
    %27 = vector.multi_reduction <add>, %13, %cst_22 [1] : vector<8x512xf32> to vector<8xf32>
    %28 = vector.shape_cast %27 : vector<8xf32> to vector<8x1xf32>
    %29 = arith.mulf %13, %13 : vector<8x512xf32>
    %cst_23 = arith.constant dense<0.000000e+00> : vector<8xf32>
    %30 = vector.multi_reduction <add>, %29, %cst_23 [1] : vector<8x512xf32> to vector<8xf32>
    %31 = vector.shape_cast %30 : vector<8xf32> to vector<8x1xf32>
    %32 = tpu.concatenate %23, %26, %28, %31 in 1 : vector<8x1xf32>, vector<8x1xf32>, vector<8x1xf32>, vector<8x1xf32> -> vector<8x4xf32>
    %c0_24 = arith.constant 0 : index
    %c0_25 = arith.constant 0 : index
    %c0_26 = arith.constant 0 : index
    %33 = vector.load %arg10[%c0_24, %c0_25, %c0_26] : memref<1x8x4xf32, #tpu.memory_space<vmem>>, vector<1x8x4xf32>
    %34 = vector.shape_cast %33 : vector<1x8x4xf32> to vector<8x4xf32>
    %35 = vector.shape_cast %32 : vector<8x4xf32> to vector<1x8x4xf32>
    tpu.vector_store %arg10[%c0_24, %c0_25, %c0_26], %35 {strides = array<i32>} : memref<1x8x4xf32, #tpu.memory_space<vmem>>, vector<1x8x4xf32>,
    return
  }
  func.func @transform_0(%arg0: i32, %arg1: i32) -> (i32, i32, i32) {
    %c0_i32 = arith.constant 0 : i32
    %c0_i32_0 = arith.constant 0 : i32
    return %arg0, %c0_i32, %arg1 : i32, i32, i32
  }
  func.func @transform_1(%arg0: i32, %arg1: i32) -> (i32, i32, i32) {
    %c0_i32 = arith.constant 0 : i32
    %c0_i32_0 = arith.constant 0 : i32
    return %arg0, %c0_i32, %arg1 : i32, i32, i32
  }
  func.func @transform_2(%arg0: i32, %arg1: i32) -> (i32, i32) {
    %c0_i32 = arith.constant 0 : i32
    %c0_i32_0 = arith.constant 0 : i32
    %c0_i32_1 = arith.constant 0 : i32
    return %c0_i32, %c0_i32_0 : i32, i32
  }
  func.func @transform_3(%arg0: i32, %arg1: i32) -> (i32, i32) {
    %c0_i32 = arith.constant 0 : i32
    %c0_i32_0 = arith.constant 0 : i32
    %c0_i32_1 = arith.constant 0 : i32
    return %c0_i32, %c0_i32_0 : i32, i32
  }
  func.func @transform_4(%arg0: i32, %arg1: i32) -> (i32, i32) {
    %c0_i32 = arith.constant 0 : i32
    %c0_i32_0 = arith.constant 0 : i32
    %c0_i32_1 = arith.constant 0 : i32
    return %c0_i32, %c0_i32_0 : i32, i32
  }
  func.func @transform_5(%arg0: i32, %arg1: i32) -> (i32, i32) {
    %c0_i32 = arith.constant 0 : i32
    %c0_i32_0 = arith.constant 0 : i32
    %c0_i32_1 = arith.constant 0 : i32
    return %c0_i32, %c0_i32_0 : i32, i32
  }
  func.func @transform_6(%arg0: i32, %arg1: i32) -> (i32, i32, i32) {
    %c0_i32 = arith.constant 0 : i32
    %c0_i32_0 = arith.constant 0 : i32
    return %arg0, %c0_i32, %arg1 : i32, i32, i32
  }
  func.func @transform_7(%arg0: i32, %arg1: i32) -> (i32, i32, i32) {
    %c0_i32 = arith.constant 0 : i32
    %c0_i32_0 = arith.constant 0 : i32
    return %arg0, %c0_i32, %arg1 : i32, i32, i32
  }
  func.func @transform_8(%arg0: i32, %arg1: i32) -> (i32, i32, i32) {
    %c1_i32 = arith.constant 1 : i32
    %0 = arith.muli %arg0, %c1_i32 : i32
    %1 = arith.addi %0, %arg1 : i32
    %c0_i32 = arith.constant 0 : i32
    %c0_i32_0 = arith.constant 0 : i32
    %c0_i32_1 = arith.constant 0 : i32
    return %1, %c0_i32, %c0_i32_0 : i32, i32, i32
  }
}

module attributes {stable_mosaic.version = 11 : i64} {
  func.func @_psi_pre_kernel(%arg0: i32, %arg1: i32, %arg2: memref<1x8x512xbf16, #tpu.memory_space<vmem>>, %arg3: memref<1x8x512xbf16, #tpu.memory_space<vmem>>, %arg4: memref<8x1xf32, #tpu.memory_space<vmem>>, %arg5: memref<8x1xf32, #tpu.memory_space<vmem>>, %arg6: memref<8x1xf32, #tpu.memory_space<vmem>>, %arg7: memref<8x1xf32, #tpu.memory_space<vmem>>, %arg8: memref<1x1xf32, #tpu.memory_space<vmem>>, %arg9: memref<1x1x512xf32, #tpu.memory_space<vmem>>, %arg10: memref<1x1x2xf32, #tpu.memory_space<vmem>>) attributes {dimension_semantics = [#tpu.dimension_semantics<parallel>, #tpu.dimension_semantics<parallel>], iteration_bounds = array<i64: 2, 1>, scalar_prefetch = 0 : i64, scratch_operands = 0 : i64, tpu.core_type = #tpu.core_type<tc>, window_params = [{transform_indices = @transform_0, window_bounds = array<i64: 1, 8, 512>}, {transform_indices = @transform_1, window_bounds = array<i64: 1, 8, 512>}, {pipeline_mode = #tpu.pipeline_mode<synchronous>, transform_indices = @transform_2, window_bounds = array<i64: 8, 1>}, {pipeline_mode = #tpu.pipeline_mode<synchronous>, transform_indices = @transform_3, window_bounds = array<i64: 8, 1>}, {pipeline_mode = #tpu.pipeline_mode<synchronous>, transform_indices = @transform_4, window_bounds = array<i64: 8, 1>}, {pipeline_mode = #tpu.pipeline_mode<synchronous>, transform_indices = @transform_5, window_bounds = array<i64: 8, 1>}, {pipeline_mode = #tpu.pipeline_mode<synchronous>, transform_indices = @transform_6, window_bounds = array<i64: 1, 1>}, {transform_indices = @transform_7, window_bounds = array<i64: 1, 1, 512>}, {transform_indices = @transform_8, window_bounds = array<i64: 1, 1, 2>}]} {
    %c0 = arith.constant 0 : index
    %c0_0 = arith.constant 0 : index
    %c0_1 = arith.constant 0 : index
    %0 = vector.load %arg2[%c0, %c0_0, %c0_1] : memref<1x8x512xbf16, #tpu.memory_space<vmem>>, vector<1x8x512xbf16>
    %1 = vector.shape_cast %0 : vector<1x8x512xbf16> to vector<8x512xbf16>
    %2 = arith.extf %1 : vector<8x512xbf16> to vector<8x512xf32>
    %c0_2 = arith.constant 0 : index
    %c0_3 = arith.constant 0 : index
    %c0_4 = arith.constant 0 : index
    %3 = vector.load %arg3[%c0_2, %c0_3, %c0_4] : memref<1x8x512xbf16, #tpu.memory_space<vmem>>, vector<1x8x512xbf16>
    %4 = vector.shape_cast %3 : vector<1x8x512xbf16> to vector<8x512xbf16>
    %5 = arith.extf %4 : vector<8x512xbf16> to vector<8x512xf32>
    %c0_5 = arith.constant 0 : index
    %c0_6 = arith.constant 0 : index
    %6 = vector.load %arg4[%c0_5, %c0_6] : memref<8x1xf32, #tpu.memory_space<vmem>>, vector<8x1xf32>
    %7 = vector.broadcast %6 : vector<8x1xf32> to vector<8x512xf32>
    %8 = arith.mulf %2, %7 : vector<8x512xf32>
    %c0_7 = arith.constant 0 : index
    %c0_8 = arith.constant 0 : index
    %9 = vector.load %arg5[%c0_7, %c0_8] : memref<8x1xf32, #tpu.memory_space<vmem>>, vector<8x1xf32>
    %10 = vector.broadcast %9 : vector<8x1xf32> to vector<8x512xf32>
    %11 = arith.mulf %5, %10 : vector<8x512xf32>
    %12 = arith.addf %8, %11 : vector<8x512xf32>
    %c0_9 = arith.constant 0 : index
    %c0_10 = arith.constant 0 : index
    %13 = vector.load %arg6[%c0_9, %c0_10] : memref<8x1xf32, #tpu.memory_space<vmem>>, vector<8x1xf32>
    %14 = vector.broadcast %13 : vector<8x1xf32> to vector<8x512xf32>
    %15 = arith.addf %12, %14 : vector<8x512xf32>
    %cst = arith.constant 0.000000e+00 : f32
    %16 = vector.broadcast %cst : f32 to vector<8x512xf32>
    %17 = arith.maximumf %15, %16 : vector<8x512xf32>
    %c0_11 = arith.constant 0 : index
    %c0_12 = arith.constant 0 : index
    %18 = vector.load %arg7[%c0_11, %c0_12] : memref<8x1xf32, #tpu.memory_space<vmem>>, vector<8x1xf32>
    %19 = vector.broadcast %18 : vector<8x1xf32> to vector<8x512xf32>
    %20 = arith.mulf %17, %19 : vector<8x512xf32>
    %cst_13 = arith.constant dense<0.000000e+00> : vector<512xf32>
    %21 = vector.multi_reduction <add>, %20, %cst_13 [0] : vector<8x512xf32> to vector<512xf32>
    %22 = vector.shape_cast %21 : vector<512xf32> to vector<1x512xf32>
    %c0_14 = arith.constant 0 : index
    %c0_15 = arith.constant 0 : index
    %23 = vector.load %arg8[%c0_14, %c0_15] : memref<1x1xf32, #tpu.memory_space<vmem>>, vector<1x1xf32>
    %24 = vector.broadcast %23 : vector<1x1xf32> to vector<1x512xf32>
    %25 = arith.addf %22, %24 : vector<1x512xf32>
    %c0_16 = arith.constant 0 : index
    %c0_17 = arith.constant 0 : index
    %c0_18 = arith.constant 0 : index
    %26 = vector.load %arg9[%c0_16, %c0_17, %c0_18] : memref<1x1x512xf32, #tpu.memory_space<vmem>>, vector<1x1x512xf32>
    %27 = vector.shape_cast %26 : vector<1x1x512xf32> to vector<1x512xf32>
    %28 = vector.shape_cast %25 : vector<1x512xf32> to vector<1x1x512xf32>
    tpu.vector_store %arg9[%c0_16, %c0_17, %c0_18], %28 {strides = array<i32>} : memref<1x1x512xf32, #tpu.memory_space<vmem>>, vector<1x1x512xf32>,
    %cst_19 = arith.constant dense<0.000000e+00> : vector<1xf32>
    %29 = vector.multi_reduction <add>, %25, %cst_19 [1] : vector<1x512xf32> to vector<1xf32>
    %30 = vector.shape_cast %29 : vector<1xf32> to vector<1x1xf32>
    %31 = arith.mulf %25, %25 : vector<1x512xf32>
    %cst_20 = arith.constant dense<0.000000e+00> : vector<1xf32>
    %32 = vector.multi_reduction <add>, %31, %cst_20 [1] : vector<1x512xf32> to vector<1xf32>
    %33 = vector.shape_cast %32 : vector<1xf32> to vector<1x1xf32>
    %34 = tpu.concatenate %30, %33 in 1 : vector<1x1xf32>, vector<1x1xf32> -> vector<1x2xf32>
    %c0_21 = arith.constant 0 : index
    %c0_22 = arith.constant 0 : index
    %c0_23 = arith.constant 0 : index
    %35 = vector.load %arg10[%c0_21, %c0_22, %c0_23] : memref<1x1x2xf32, #tpu.memory_space<vmem>>, vector<1x1x2xf32>
    %36 = vector.shape_cast %35 : vector<1x1x2xf32> to vector<1x2xf32>
    %37 = vector.shape_cast %34 : vector<1x2xf32> to vector<1x1x2xf32>
    tpu.vector_store %arg10[%c0_21, %c0_22, %c0_23], %37 {strides = array<i32>} : memref<1x1x2xf32, #tpu.memory_space<vmem>>, vector<1x1x2xf32>,
    return
  }
  func.func @transform_0(%arg0: i32, %arg1: i32) -> (i32, i32, i32) {
    %c0_i32 = arith.constant 0 : i32
    %c0_i32_0 = arith.constant 0 : i32
    return %arg0, %c0_i32, %arg1 : i32, i32, i32
  }
  func.func @transform_1(%arg0: i32, %arg1: i32) -> (i32, i32, i32) {
    %c0_i32 = arith.constant 0 : i32
    %c0_i32_0 = arith.constant 0 : i32
    return %arg0, %c0_i32, %arg1 : i32, i32, i32
  }
  func.func @transform_2(%arg0: i32, %arg1: i32) -> (i32, i32) {
    %c0_i32 = arith.constant 0 : i32
    %c0_i32_0 = arith.constant 0 : i32
    %c0_i32_1 = arith.constant 0 : i32
    return %c0_i32, %c0_i32_0 : i32, i32
  }
  func.func @transform_3(%arg0: i32, %arg1: i32) -> (i32, i32) {
    %c0_i32 = arith.constant 0 : i32
    %c0_i32_0 = arith.constant 0 : i32
    %c0_i32_1 = arith.constant 0 : i32
    return %c0_i32, %c0_i32_0 : i32, i32
  }
  func.func @transform_4(%arg0: i32, %arg1: i32) -> (i32, i32) {
    %c0_i32 = arith.constant 0 : i32
    %c0_i32_0 = arith.constant 0 : i32
    %c0_i32_1 = arith.constant 0 : i32
    return %c0_i32, %c0_i32_0 : i32, i32
  }
  func.func @transform_5(%arg0: i32, %arg1: i32) -> (i32, i32) {
    %c0_i32 = arith.constant 0 : i32
    %c0_i32_0 = arith.constant 0 : i32
    %c0_i32_1 = arith.constant 0 : i32
    return %c0_i32, %c0_i32_0 : i32, i32
  }
  func.func @transform_6(%arg0: i32, %arg1: i32) -> (i32, i32) {
    %c0_i32 = arith.constant 0 : i32
    %c0_i32_0 = arith.constant 0 : i32
    %c0_i32_1 = arith.constant 0 : i32
    return %c0_i32, %c0_i32_0 : i32, i32
  }
  func.func @transform_7(%arg0: i32, %arg1: i32) -> (i32, i32, i32) {
    %c0_i32 = arith.constant 0 : i32
    %c0_i32_0 = arith.constant 0 : i32
    return %arg0, %c0_i32, %arg1 : i32, i32, i32
  }
  func.func @transform_8(%arg0: i32, %arg1: i32) -> (i32, i32, i32) {
    %c1_i32 = arith.constant 1 : i32
    %0 = arith.muli %arg0, %c1_i32 : i32
    %1 = arith.addi %0, %arg1 : i32
    %c0_i32 = arith.constant 0 : i32
    %c0_i32_0 = arith.constant 0 : i32
    %c0_i32_1 = arith.constant 0 : i32
    return %1, %c0_i32, %c0_i32_0 : i32, i32, i32
  }
}

module attributes {stable_mosaic.version = 11 : i64} {
  func.func @_gate_kernel(%arg0: i32, %arg1: i32, %arg2: memref<1x16x512xf32, #tpu.memory_space<vmem>>, %arg3: memref<1x1x512xf32, #tpu.memory_space<vmem>>, %arg4: memref<1x2xf32, #tpu.memory_space<vmem>>, %arg5: memref<1x16x512xf32, #tpu.memory_space<vmem>>) attributes {dimension_semantics = [#tpu.dimension_semantics<parallel>, #tpu.dimension_semantics<parallel>], iteration_bounds = array<i64: 2, 1>, scalar_prefetch = 0 : i64, scratch_operands = 0 : i64, tpu.core_type = #tpu.core_type<tc>, window_params = [{transform_indices = @transform_0, window_bounds = array<i64: 1, 16, 512>}, {transform_indices = @transform_1, window_bounds = array<i64: 1, 1, 512>}, {pipeline_mode = #tpu.pipeline_mode<synchronous>, transform_indices = @transform_2, window_bounds = array<i64: 1, 2>}, {transform_indices = @transform_3, window_bounds = array<i64: 1, 16, 512>}]} {
    %c0 = arith.constant 0 : index
    %c0_0 = arith.constant 0 : index
    %c0_1 = arith.constant 0 : index
    %0 = vector.load %arg3[%c0, %c0_0, %c0_1] : memref<1x1x512xf32, #tpu.memory_space<vmem>>, vector<1x1x512xf32>
    %1 = vector.shape_cast %0 : vector<1x1x512xf32> to vector<1x512xf32>
    %c0_2 = arith.constant 0 : index
    %c0_3 = arith.constant 0 : index
    %2 = vector.load %arg4[%c0_2, %c0_3] : memref<1x2xf32, #tpu.memory_space<vmem>>, vector<1x1xf32>
    %3 = vector.broadcast %2 : vector<1x1xf32> to vector<1x512xf32>
    %4 = arith.mulf %1, %3 : vector<1x512xf32>
    %c0_4 = arith.constant 0 : index
    %c1 = arith.constant 1 : index
    %5 = vector.load %arg4[%c0_4, %c1] : memref<1x2xf32, #tpu.memory_space<vmem>>, vector<1x1xf32>
    %6 = vector.broadcast %5 : vector<1x1xf32> to vector<1x512xf32>
    %7 = arith.addf %4, %6 : vector<1x512xf32>
    %8 = arith.negf %7 : vector<1x512xf32>
    %9 = math.exp %8 : vector<1x512xf32>
    %cst = arith.constant 1.000000e+00 : f32
    %10 = vector.broadcast %cst : f32 to vector<1x512xf32>
    %11 = arith.addf %10, %9 : vector<1x512xf32>
    %12 = arith.divf %10, %11 : vector<1x512xf32>
    %c0_5 = arith.constant 0 : index
    %c0_6 = arith.constant 0 : index
    %c0_7 = arith.constant 0 : index
    %13 = vector.load %arg2[%c0_5, %c0_6, %c0_7] : memref<1x16x512xf32, #tpu.memory_space<vmem>>, vector<1x16x512xf32>
    %14 = vector.shape_cast %13 : vector<1x16x512xf32> to vector<16x512xf32>
    %15 = vector.broadcast %12 : vector<1x512xf32> to vector<16x512xf32>
    %16 = arith.mulf %14, %15 : vector<16x512xf32>
    %c0_8 = arith.constant 0 : index
    %c0_9 = arith.constant 0 : index
    %c0_10 = arith.constant 0 : index
    %17 = vector.load %arg5[%c0_8, %c0_9, %c0_10] : memref<1x16x512xf32, #tpu.memory_space<vmem>>, vector<1x16x512xf32>
    %18 = vector.shape_cast %17 : vector<1x16x512xf32> to vector<16x512xf32>
    %19 = vector.shape_cast %16 : vector<16x512xf32> to vector<1x16x512xf32>
    tpu.vector_store %arg5[%c0_8, %c0_9, %c0_10], %19 {strides = array<i32>} : memref<1x16x512xf32, #tpu.memory_space<vmem>>, vector<1x16x512xf32>,
    return
  }
  func.func @transform_0(%arg0: i32, %arg1: i32) -> (i32, i32, i32) {
    %c0_i32 = arith.constant 0 : i32
    %c0_i32_0 = arith.constant 0 : i32
    return %arg0, %c0_i32, %arg1 : i32, i32, i32
  }
  func.func @transform_1(%arg0: i32, %arg1: i32) -> (i32, i32, i32) {
    %c0_i32 = arith.constant 0 : i32
    %c0_i32_0 = arith.constant 0 : i32
    return %arg0, %c0_i32, %arg1 : i32, i32, i32
  }
  func.func @transform_2(%arg0: i32, %arg1: i32) -> (i32, i32) {
    %c0_i32 = arith.constant 0 : i32
    %c0_i32_0 = arith.constant 0 : i32
    %c0_i32_1 = arith.constant 0 : i32
    return %c0_i32, %c0_i32_0 : i32, i32
  }
  func.func @transform_3(%arg0: i32, %arg1: i32) -> (i32, i32, i32) {
    %c0_i32 = arith.constant 0 : i32
    %c0_i32_0 = arith.constant 0 : i32
    return %arg0, %c0_i32, %arg1 : i32, i32, i32
  }
}

</mosaic_0001>

<llo_original>
// kernel: attention_block_forward.4
$region0: #{attention_block_forward.4}
  #allocation0 [shape = 'u32[]', space=smem, size = 0x4, offset = 0x4, fixed_abs, tag = 'smem constant byte address 0x4 - core index']
  #allocation1 [shape = 'u32[144,128]{1,0:T(1,128)}', space=vmem, size = 0x12000, scoped, tag = 'internal scratch']
  #allocation2 [shape = 'f32[1,1]{1,0:T(1,128)S(1)}', space=vmem, size = 0x200, scoped, tag = 'scoped memory for attention_block_forward.4']
  %s0 = inlined_call_operand.vmem [shape: bf16[2,8,512], index: 0, kind: input, shape index: {}]
  %s1 = inlined_call_operand.vmem [shape: bf16[2,8,512], index: 1, kind: input, shape index: {}]
  %s2 = inlined_call_operand.vmem [shape: f32[8,1], index: 2, kind: input, shape index: {}]
  %s3 = inlined_call_operand.vmem [shape: f32[8,1], index: 3, kind: input, shape index: {}]
  %s4 = inlined_call_operand.vmem [shape: f32[8,1], index: 4, kind: input, shape index: {}]
  %s5 = inlined_call_operand.vmem [shape: f32[8,1], index: 5, kind: input, shape index: {}]
  %s6 = inlined_call_operand.<no memory space> [shape: f32[1,1], index: 6, kind: input, shape index: {}]
  %s7 = inlined_call_operand.vmem [shape: f32[2,1,512], index: 7, kind: output, shape index: {0}]
  %s8 = inlined_call_operand.vmem [shape: f32[2,1,2], index: 8, kind: output, shape index: {1}]
  %9 = xla_tuple %s7, %s8
  %s10 = sld [smem:[#allocation0]]
  $region69: #{attention_block_forward.4} parent=0
    _
  %s12 = ssub.s32 1, %s10
  %s13 = scalar_select 0, %s12, %s10
  %v14 = vstv %s6
  %15 = vst [vmem:[#allocation2] sm:$0x1] %v14
  loop: start=0, step=1, limit=4
  $region2: #{attention_block_forward.4} parent=0 // loop_pre_header
    _
  $region3: #{attention_block_forward.4} parent=0 // loop_header
    %s17 = sphi 0, %s21
    %p18 = scmp.ge.s32.totalorder %s17, 4
    %s24 = sphi 0, %s36
    %s25 = sphi 0, %s32
    %s26 = sphi 0, %s24
    %s27 = sphi 0, %s25
    %s28 = sphi 0, %s26
    %s29 = sphi 0, %s27
    %s41 = sphi 0, %s43
    %s44 = sphi 0, %s41
    %s45 = sphi 0, %s44
    %s61 = sphi 0, %s45
    %s69 = sphi 0, %s71
    %s72 = sphi 0, %s69
    %s73 = sphi 0, %s72
    %s89 = sphi 0, %s73
    %s93 = sphi 0, %s93
    %s95 = sphi 0, %s93
    %s96 = sphi 0, %s95
    %s110 = sphi 0, %s96
    %s114 = sphi 0, %s114
    %s116 = sphi 0, %s114
    %s117 = sphi 0, %s116
    %s131 = sphi 0, %s117
    %s135 = sphi 0, %s135
    %s137 = sphi 0, %s135
    %s138 = sphi 0, %s137
    %s152 = sphi 0, %s138
    %s156 = sphi 0, %s156
    %s158 = sphi 0, %s156
    %s159 = sphi 0, %s158
    %s173 = sphi 0, %s159
    %s177 = sphi 0, %s177
    %s179 = sphi 0, %s177
    %s180 = sphi 0, %s179
    %s194 = sphi 0, %s180
    %s202 = sphi 0, %s204
    %s205 = sphi 0, %s202
    %s206 = sphi 0, %s205
    %s222 = sphi 0, %s206
    %s230 = sphi 0, %s232
    %s233 = sphi 0, %s230
    %s234 = sphi 0, %s233
    %s250 = sphi 0, %s234
  $region4: #{attention_block_forward.4} parent=0 // loop_header_branch
    %20 = sbr.rel (%p18) target = $region8
  $region5: #{attention_block_forward.4} parent=0 // loop_body
    %s22 = ssub.s32 %s17, 1
    %s23 = ssub.s32 %s17, 2
    %s30 = sadd.s32 1, %s25
    %p31 = scmp.ge.s32.totalorder %s30, 1
    %s32 = scalar_select %p31, 0, %s30
    %s33 = sadd.s32 1, %s24
    %s34 = scalar_select %p31, %s33, %s24
    %p35 = scmp.ge.s32.totalorder %s34, 2
    %s36 = scalar_select %p35, 0, %s34
    %s37 = ssub.s32 %s24, %s36
    %s38 = ssub.s32 %s25, %s32
    %s39 = sor.u32 %s37, %s38
    %p40 = scmp.eq.s32.totalorder %s39, 0
    %s42 = sadd.s32 %s41, 1
    %s43 = scalar_select %p40, %s41, %s42
    %p46 = pneg %p40
    %p47 = scmp.eq.s32.totalorder %s17, 1
    %p48 = por %p46, %p47
    %p49 = scmp.ne.s32.totalorder %s41, %s44
    %p50 = scmp.eq.s32.totalorder %s17, 0
    %p51 = por %p49, %p50
    %p52 = scmp.ne.s32.totalorder %s41, %s44
    %p53 = scmp.eq.s32.totalorder %s22, 1
    %p54 = por %p52, %p53
    %p55 = scmp.ne.s32.totalorder %s44, %s45
    %p56 = scmp.eq.s32.totalorder %s22, 0
    %p57 = por %p55, %p56
    %p58 = scmp.ne.s32.totalorder %s44, %s45
    %p59 = scmp.eq.s32.totalorder %s23, 1
    %p60 = por %p58, %p59
    %p62 = scmp.ne.s32.totalorder %s45, %s61
    %p63 = scmp.eq.s32.totalorder %s23, 0
    %p64 = por %p62, %p63
    %s65 = ssub.s32 %s24, %s36
    %s66 = ssub.s32 %s25, %s32
    %s67 = sor.u32 %s65, %s66
    %p68 = scmp.eq.s32.totalorder %s67, 0
    %s70 = sadd.s32 %s69, 1
    %s71 = scalar_select %p68, %s69, %s70
    %p74 = pneg %p68
    %p75 = scmp.eq.s32.totalorder %s17, 1
    %p76 = por %p74, %p75
    %p77 = scmp.ne.s32.totalorder %s69, %s72
    %p78 = scmp.eq.s32.totalorder %s17, 0
    %p79 = por %p77, %p78
    %p80 = scmp.ne.s32.totalorder %s69, %s72
    %p81 = scmp.eq.s32.totalorder %s22, 1
    %p82 = por %p80, %p81
    %p83 = scmp.ne.s32.totalorder %s72, %s73
    %p84 = scmp.eq.s32.totalorder %s22, 0
    %p85 = por %p83, %p84
    %p86 = scmp.ne.s32.totalorder %s72, %s73
    %p87 = scmp.eq.s32.totalorder %s23, 1
    %p88 = por %p86, %p87
    %p90 = scmp.ne.s32.totalorder %s73, %s89
    %p91 = scmp.eq.s32.totalorder %s23, 0
    %p92 = por %p90, %p91
    %s94 = sadd.s32 %s93, 1
    %p97 = scmp.eq.s32.totalorder %s17, 1
    %p98 = scmp.ne.s32.totalorder %s93, %s95
    %p99 = scmp.eq.s32.totalorder %s17, 0
    %p100 = por %p98, %p99
    %p101 = scmp.ne.s32.totalorder %s93, %s95
    %p102 = scmp.eq.s32.totalorder %s22, 1
    %p103 = por %p101, %p102
    %p104 = scmp.ne.s32.totalorder %s95, %s96
    %p105 = scmp.eq.s32.totalorder %s22, 0
    %p106 = por %p104, %p105
    %p107 = scmp.ne.s32.totalorder %s95, %s96
    %p108 = scmp.eq.s32.totalorder %s23, 1
    %p109 = por %p107, %p108
    %p111 = scmp.ne.s32.totalorder %s96, %s110
    %p112 = scmp.eq.s32.totalorder %s23, 0
    %p113 = por %p111, %p112
    %s115 = sadd.s32 %s114, 1
    %p118 = scmp.eq.s32.totalorder %s17, 1
    %p119 = scmp.ne.s32.totalorder %s114, %s116
    %p120 = scmp.eq.s32.totalorder %s17, 0
    %p121 = por %p119, %p120
    %p122 = scmp.ne.s32.totalorder %s114, %s116
    %p123 = scmp.eq.s32.totalorder %s22, 1
    %p124 = por %p122, %p123
    %p125 = scmp.ne.s32.totalorder %s116, %s117
    %p126 = scmp.eq.s32.totalorder %s22, 0
    %p127 = por %p125, %p126
    %p128 = scmp.ne.s32.totalorder %s116, %s117
    %p129 = scmp.eq.s32.totalorder %s23, 1
    %p130 = por %p128, %p129
    %p132 = scmp.ne.s32.totalorder %s117, %s131
    %p133 = scmp.eq.s32.totalorder %s23, 0
    %p134 = por %p132, %p133
    %s136 = sadd.s32 %s135, 1
    %p139 = scmp.eq.s32.totalorder %s17, 1
    %p140 = scmp.ne.s32.totalorder %s135, %s137
    %p141 = scmp.eq.s32.totalorder %s17, 0
    %p142 = por %p140, %p141
    %p143 = scmp.ne.s32.totalorder %s135, %s137
    %p144 = scmp.eq.s32.totalorder %s22, 1
    %p145 = por %p143, %p144
    %p146 = scmp.ne.s32.totalorder %s137, %s138
    %p147 = scmp.eq.s32.totalorder %s22, 0
    %p148 = por %p146, %p147
    %p149 = scmp.ne.s32.totalorder %s137, %s138
    %p150 = scmp.eq.s32.totalorder %s23, 1
    %p151 = por %p149, %p150
    %p153 = scmp.ne.s32.totalorder %s138, %s152
    %p154 = scmp.eq.s32.totalorder %s23, 0
    %p155 = por %p153, %p154
    %s157 = sadd.s32 %s156, 1
    %p160 = scmp.eq.s32.totalorder %s17, 1
    %p161 = scmp.ne.s32.totalorder %s156, %s158
    %p162 = scmp.eq.s32.totalorder %s17, 0
    %p163 = por %p161, %p162
    %p164 = scmp.ne.s32.totalorder %s156, %s158
    %p165 = scmp.eq.s32.totalorder %s22, 1
    %p166 = por %p164, %p165
    %p167 = scmp.ne.s32.totalorder %s158, %s159
    %p168 = scmp.eq.s32.totalorder %s22, 0
    %p169 = por %p167, %p168
    %p170 = scmp.ne.s32.totalorder %s158, %s159
    %p171 = scmp.eq.s32.totalorder %s23, 1
    %p172 = por %p170, %p171
    %p174 = scmp.ne.s32.totalorder %s159, %s173
    %p175 = scmp.eq.s32.totalorder %s23, 0
    %p176 = por %p174, %p175
    %s178 = sadd.s32 %s177, 1
    %p181 = scmp.eq.s32.totalorder %s17, 1
    %p182 = scmp.ne.s32.totalorder %s177, %s179
    %p183 = scmp.eq.s32.totalorder %s17, 0
    %p184 = por %p182, %p183
    %p185 = scmp.ne.s32.totalorder %s177, %s179
    %p186 = scmp.eq.s32.totalorder %s22, 1
    %p187 = por %p185, %p186
    %p188 = scmp.ne.s32.totalorder %s179, %s180
    %p189 = scmp.eq.s32.totalorder %s22, 0
    %p190 = por %p188, %p189
    %p191 = scmp.ne.s32.totalorder %s179, %s180
    %p192 = scmp.eq.s32.totalorder %s23, 1
    %p193 = por %p191, %p192
    %p195 = scmp.ne.s32.totalorder %s180, %s194
    %p196 = scmp.eq.s32.totalorder %s23, 0
    %p197 = por %p195, %p196
    %s198 = ssub.s32 %s24, %s36
    %s199 = ssub.s32 %s25, %s32
    %s200 = sor.u32 %s198, %s199
    %p201 = scmp.eq.s32.totalorder %s200, 0
    %s203 = sadd.s32 %s202, 1
    %s204 = scalar_select %p201, %s202, %s203
    %p207 = pneg %p201
    %p208 = scmp.eq.s32.totalorder %s17, 1
    %p209 = por %p207, %p208
    %p210 = scmp.ne.s32.totalorder %s202, %s205
    %p211 = scmp.eq.s32.totalorder %s17, 0
    %p212 = por %p210, %p211
    %p213 = scmp.ne.s32.totalorder %s202, %s205
    %p214 = scmp.eq.s32.totalorder %s22, 1
    %p215 = por %p213, %p214
    %p216 = scmp.ne.s32.totalorder %s205, %s206
    %p217 = scmp.eq.s32.totalorder %s22, 0
    %p218 = por %p216, %p217
    %p219 = scmp.ne.s32.totalorder %s205, %s206
    %p220 = scmp.eq.s32.totalorder %s23, 1
    %p221 = por %p219, %p220
    %p223 = scmp.ne.s32.totalorder %s206, %s222
    %p224 = scmp.eq.s32.totalorder %s23, 0
    %p225 = por %p223, %p224
    %s226 = sadd.s32 %s24, %s25
    %s227 = sadd.s32 %s36, %s32
    %s228 = ssub.s32 %s226, %s227
    %p229 = scmp.eq.s32.totalorder %s228, 0
    %s231 = sadd.s32 %s230, 1
    %s232 = scalar_select %p229, %s230, %s231
    %p235 = pneg %p229
    %p236 = scmp.eq.s32.totalorder %s17, 1
    %p237 = por %p235, %p236
    %p238 = scmp.ne.s32.totalorder %s230, %s233
    %p239 = scmp.eq.s32.totalorder %s17, 0
    %p240 = por %p238, %p239
    %p241 = scmp.ne.s32.totalorder %s230, %s233
    %p242 = scmp.eq.s32.totalorder %s22, 1
    %p243 = por %p241, %p242
    %p244 = scmp.ne.s32.totalorder %s233, %s234
    %p245 = scmp.eq.s32.totalorder %s22, 0
    %p246 = por %p244, %p245
    %p247 = scmp.ne.s32.totalorder %s233, %s234
    %p248 = scmp.eq.s32.totalorder %s23, 1
    %p249 = por %p247, %p248
    %p251 = scmp.ne.s32.totalorder %s234, %s250
    %p252 = scmp.eq.s32.totalorder %s23, 0
    %p253 = por %p251, %p252
    %p254 = scmp.le.s32.totalorder 1, %s17
    %p255 = scmp.lt.s32.totalorder %s17, 3
    %p256 = pnand %p254, %p255
    %p257 = pneg %p256
    // Predicated region
    $region9: #{attention_block_forward.4} parent=5 // pred_check
      _
    $region10: #{attention_block_forward.4} parent=5 // pred_check_branch
      %259 = sbr.rel (%p256) target = $region12
    $region11: #{attention_block_forward.4} parent=5 // pred_region
      %s260 = ssub.s32 %s17, 1
      // Predicated region
      $region13: #{attention_block_forward.4} parent=11 // pred_check
        %p261 = pneg %p106
      $region14: #{attention_block_forward.4} parent=11 // pred_check_branch
        %263 = sbr.rel (%p261) target = $region16
      $region15: #{attention_block_forward.4} parent=11 // pred_region
        _
      $region16: #{attention_block_forward.4} parent=11 // pred_fallthru
        _
      // Predicated region
      $region17: #{attention_block_forward.4} parent=11 // pred_check
        %p264 = pneg %p127
      $region18: #{attention_block_forward.4} parent=11 // pred_check_branch
        %266 = sbr.rel (%p264) target = $region20
      $region19: #{attention_block_forward.4} parent=11 // pred_region
        _
      $region20: #{attention_block_forward.4} parent=11 // pred_fallthru
        _
      // Predicated region
      $region21: #{attention_block_forward.4} parent=11 // pred_check
        %p267 = pneg %p148
      $region22: #{attention_block_forward.4} parent=11 // pred_check_branch
        %269 = sbr.rel (%p267) target = $region24
      $region23: #{attention_block_forward.4} parent=11 // pred_region
        _
      $region24: #{attention_block_forward.4} parent=11 // pred_fallthru
        _
      // Predicated region
      $region25: #{attention_block_forward.4} parent=11 // pred_check
        %p270 = pneg %p169
      $region26: #{attention_block_forward.4} parent=11 // pred_check_branch
        %272 = sbr.rel (%p270) target = $region28
      $region27: #{attention_block_forward.4} parent=11 // pred_region
        _
      $region28: #{attention_block_forward.4} parent=11 // pred_fallthru
        _
      // Predicated region
      $region29: #{attention_block_forward.4} parent=11 // pred_check
        %p273 = pneg %p190
      $region30: #{attention_block_forward.4} parent=11 // pred_check_branch
        %275 = sbr.rel (%p273) target = $region32
      $region31: #{attention_block_forward.4} parent=11 // pred_region
        _
      $region32: #{attention_block_forward.4} parent=11 // pred_fallthru
        _
    $region12: #{attention_block_forward.4} parent=5 // pred_fallthru
      _
    %p276 = scmp.lt.s32.totalorder %s17, 2
    // Predicated region
    $region33: #{attention_block_forward.4} parent=5 // pred_check
      %p277 = pneg %p276
    $region34: #{attention_block_forward.4} parent=5 // pred_check_branch
      %279 = sbr.rel (%p277) target = $region36
    $region35: #{attention_block_forward.4} parent=5 // pred_region
      // Predicated region
      $region37: #{attention_block_forward.4} parent=35 // pred_check
        %p280 = pneg %p51
      $region38: #{attention_block_forward.4} parent=35 // pred_check_branch
        %282 = sbr.rel (%p280) target = $region40
      $region39: #{attention_block_forward.4} parent=35 // pred_region
        %s283 = smul.u32 4, %s25
        %p284 = scmp.lt.s32.totalorder %s24, 1
        %s285 = scalar_select %p284, %s24, 1
        %p286 = scmp.lt.s32.totalorder %s283, 3
        %s287 = scalar_select %p286, %s283, 3
        %s288 = smul.addr %s285, 4
        %s289 = sadd.s32 %s287, %s288
        %s290 = smul.addr %s289, 4
        %s291 = scalar_lea.vmem %s0, %s290
        %s292 = smul.u32 4, %s25
      $region40: #{attention_block_forward.4} parent=35 // pred_fallthru
        _
      // Predicated region
      $region41: #{attention_block_forward.4} parent=35 // pred_check
        %p293 = pneg %p79
      $region42: #{attention_block_forward.4} parent=35 // pred_check_branch
        %295 = sbr.rel (%p293) target = $region44
      $region43: #{attention_block_forward.4} parent=35 // pred_region
        %s296 = smul.u32 4, %s25
        %p297 = scmp.lt.s32.totalorder %s24, 1
        %s298 = scalar_select %p297, %s24, 1
        %p299 = scmp.lt.s32.totalorder %s296, 3
        %s300 = scalar_select %p299, %s296, 3
        %s301 = smul.addr %s298, 4
        %s302 = sadd.s32 %s300, %s301
        %s303 = smul.addr %s302, 4
        %s304 = scalar_lea.vmem %s1, %s303
        %s305 = smul.u32 4, %s25
      $region44: #{attention_block_forward.4} parent=35 // pred_fallthru
        _
    $region36: #{attention_block_forward.4} parent=5 // pred_fallthru
      _
    %p306 = scmp.le.s32.totalorder 1, %s17
    %p307 = scmp.lt.s32.totalorder %s17, 3
    %p308 = pnand %p306, %p307
    %p309 = pneg %p308
    // Predicated region
    $region45: #{attention_block_forward.4} parent=5 // pred_check
      _
    $region46: #{attention_block_forward.4} parent=5 // pred_check_branch
      %311 = sbr.rel (%p308) target = $region48
    $region47: #{attention_block_forward.4} parent=5 // pred_region
      %s312 = ssub.s32 %s17, 1
      %s313 = smul.u32 4, %s27
      %p314 = scmp.lt.s32.totalorder %s26, 1
      %s315 = scalar_select %p314, %s26, 1
      %p316 = scmp.lt.s32.totalorder %s313, 3
      %s317 = scalar_select %p316, %s313, 3
      %s318 = smul.addr %s315, 4
      %s319 = sadd.s32 %s317, %s318
      %s320 = smul.addr %s319, 4
      %s321 = scalar_lea.vmem %s0, %s320
      %p322 = pneg %p57
      %p323 = pneg %p54
      %s324 = smul.u32 4, %s27
      %p325 = scmp.lt.s32.totalorder %s26, 1
      %s326 = scalar_select %p325, %s26, 1
      %p327 = scmp.lt.s32.totalorder %s324, 3
      %s328 = scalar_select %p327, %s324, 3
      %s329 = smul.addr %s326, 4
      %s330 = sadd.s32 %s328, %s329
      %s331 = smul.addr %s330, 4
      %s332 = scalar_lea.vmem %s1, %s331
      %p333 = pneg %p85
      %p334 = pneg %p82
      %p335 = pneg %p106
      %p336 = pneg %p103
      %p337 = pneg %p127
      %p338 = pneg %p124
      %p339 = pneg %p148
      %p340 = pneg %p145
      %p341 = pneg %p169
      %p342 = pneg %p166
      %p343 = pneg %p190
      %p344 = pneg %p187
      %p345 = pneg %p218
      %p346 = pneg %p215
      %s347 = smul.u32 4, %s27
      %p348 = scmp.lt.s32.totalorder %s26, 1
      %s349 = scalar_select %p348, %s26, 1
      %p350 = scmp.lt.s32.totalorder %s347, 3
      %s351 = scalar_select %p350, %s347, 3
      %s352 = smul.addr %s349, 4
      %s353 = sadd.s32 %s351, %s352
      %s354 = scalar_lea.vmem %s7, %s353
      %p355 = pneg %p246
      %p356 = pneg %p243
      %s357 = sadd.s32 %s26, %s27
      %p358 = scmp.lt.s32.totalorder %s357, 1
      %s359 = scalar_select %p358, %s357, 1
      %s360 = scalar_lea.vmem %s8, %s359
      %s361 = smul.u32 4, %s27
      %p362 = scmp.lt.s32.totalorder %s26, 1
      %s363 = scalar_select %p362, %s26, 1
      %p364 = scmp.lt.s32.totalorder %s361, 3
      %s365 = scalar_select %p364, %s361, 3
      %s366 = smul.addr %s363, 4
      %s367 = sadd.s32 %s365, %s366
      %s368 = smul.addr %s367, 4
      %s369 = scalar_lea.vmem %s0, %s368
      %s370 = smul.u32 4, %s27
      %s371 = smul.u32 4, %s27
      %p372 = scmp.lt.s32.totalorder %s26, 1
      %s373 = scalar_select %p372, %s26, 1
      %p374 = scmp.lt.s32.totalorder %s371, 3
      %s375 = scalar_select %p374, %s371, 3
      %s376 = smul.addr %s373, 4
      %s377 = sadd.s32 %s375, %s376
      %s378 = smul.addr %s377, 4
      %s379 = scalar_lea.vmem %s1, %s378
      %s380 = smul.u32 4, %s27
      %s381 = smul.u32 4, %s27
      %p382 = scmp.lt.s32.totalorder %s26, 1
      %s383 = scalar_select %p382, %s26, 1
      %p384 = scmp.lt.s32.totalorder %s381, 3
      %s385 = scalar_select %p384, %s381, 3
      %s386 = smul.addr %s383, 4
      %s387 = sadd.s32 %s385, %s386
      %s388 = scalar_lea.vmem %s7, %s387
      %s389 = smul.u32 4, %s27
      %s390 = sadd.s32 %s26, %s27
      %p391 = scmp.lt.s32.totalorder %s390, 1
      %s392 = scalar_select %p391, %s390, 1
      %s393 = scalar_lea.vmem %s8, %s392
      %s394 = sadd.s32 %s26, %s27
      %v395 = vld [vmem:[%s369] sm:$0xff]
      %v396 = vld [vmem:[%s369 + $0x8] sm:$0xff]
      %v397 = vunpack.c.l.bf16 %v395
      %v398 = vunpack.c.h.bf16 %v395
      %v399 = vunpack.c.l.bf16 %v396
      %v400 = vunpack.c.h.bf16 %v396
      %v401 = vld [vmem:[%s379] sm:$0xff]
      %v402 = vld [vmem:[%s379 + $0x8] sm:$0xff]
      %v403 = vunpack.c.l.bf16 %v401
      %v404 = vunpack.c.h.bf16 %v401
      %v405 = vunpack.c.l.bf16 %v402
      %v406 = vunpack.c.h.bf16 %v402
      %v407 = vld [vmem:[%s2] sm:$0xff]
      %409 = vset.pattern.permute.xlu0 0
      %410 = vperm.xlu0 %409, %v407
      %v411 = vpop.permute.xlu0 %410
      %v413 = vmul.f32 %v397, %v411
      %v414 = vmul.f32 %v398, %v411
      %v415 = vmul.f32 %v399, %v411
      %v416 = vmul.f32 %v400, %v411
      %v417 = vld [vmem:[%s3] sm:$0xff]
      %419 = vset.pattern.permute.xlu0 0
      %420 = vperm.xlu0 %419, %v417
      %v421 = vpop.permute.xlu0 %420
      %v423 = vmul.f32 %v403, %v421
      %v424 = vmul.f32 %v404, %v421
      %v425 = vmul.f32 %v405, %v421
      %v426 = vmul.f32 %v406, %v421
      %v427 = vadd.f32 %v413, %v423
      %v428 = vadd.f32 %v414, %v424
      %v429 = vadd.f32 %v415, %v425
      %v430 = vadd.f32 %v416, %v426
      %v431 = vld [vmem:[%s4] sm:$0xff]
      %433 = vset.pattern.permute.xlu0 0
      %434 = vperm.xlu0 %433, %v431
      %v435 = vpop.permute.xlu0 %434
      %v437 = vadd.f32 %v427, %v435
      %v438 = vadd.f32 %v428, %v435
      %v439 = vadd.f32 %v429, %v435
      %v440 = vadd.f32 %v430, %v435
      %v441 = vmax.f32 %v437, 0.0
      %v442 = vmax.f32 %v438, 0.0
      %v443 = vmax.f32 %v439, 0.0
      %v444 = vmax.f32 %v440, 0.0
      %v445 = vld [vmem:[%s5] sm:$0xff]
      %447 = vset.pattern.permute.xlu0 0
      %448 = vperm.xlu0 %447, %v445
      %v449 = vpop.permute.xlu0 %448
      %v451 = vmul.f32 %v441, %v449
      %v452 = vmul.f32 %v442, %v449
      %v453 = vmul.f32 %v443, %v449
      %v454 = vmul.f32 %v444, %v449
      %v455 = vrot.slane %v451, 4
      %v456 = vadd.f32 %v451, %v455
      %v457 = vrot.slane %v456, 2
      %v458 = vadd.f32 %v456, %v457
      %v459 = vrot.slane %v458, 1
      %v460 = vadd.f32 %v458, %v459
      %v461 = vrot.slane %v452, 4
      %v462 = vadd.f32 %v452, %v461
      %v463 = vrot.slane %v462, 2
      %v464 = vadd.f32 %v462, %v463
      %v465 = vrot.slane %v464, 1
      %v466 = vadd.f32 %v464, %v465
      %v467 = vrot.slane %v453, 4
      %v468 = vadd.f32 %v453, %v467
      %v469 = vrot.slane %v468, 2
      %v470 = vadd.f32 %v468, %v469
      %v471 = vrot.slane %v470, 1
      %v472 = vadd.f32 %v470, %v471
      %v473 = vrot.slane %v454, 4
      %v474 = vadd.f32 %v454, %v473
      %v475 = vrot.slane %v474, 2
      %v476 = vadd.f32 %v474, %v475
      %v477 = vrot.slane %v476, 1
      %v478 = vadd.f32 %v476, %v477
      %v479 = vld [vmem:[#allocation2] sm:$0x1]
      %481 = vset.pattern.permute.xlu0 0
      %482 = vperm.xlu0 %481, %v479
      %v483 = vpop.permute.xlu0 %482
      %v485 = vlaneseq
      %v486 = vshrl.u32 %v485, 7
      %v487 = vsub.s32 0, %v486
      %v488 = vrot.slane %v483, %v487
      %v489 = vadd.f32 %v460, %v488
      %v490 = vadd.f32 %v466, %v488
      %v491 = vadd.f32 %v472, %v488
      %v492 = vadd.f32 %v478, %v488
      %v497 = vcombine.low %v489, %v490
      %v498 = vcombine.low %v491, %v492
      %v500 = vunpack.c.l.s4 1966171168
      %v501 = vunpack.c.0.s8 %v500
      %v502 = vlaneseq
      %v503 = vshrl.u32 %v502, 7
      %v504 = vsub.s32 %v501, %v503
      %v505 = vrot.slane %v497, %v504
      %v507 = vunpack.c.l.s4 1966171168
      %v508 = vunpack.c.0.s8 %v507
      %v509 = vlaneseq
      %v510 = vshrl.u32 %v509, 7
      %v511 = vsub.s32 %v508, %v510
      %v512 = vrot.slane %v498, %v511
      %v513 = vcombine.low %v505, %v512
      %v515 = vunpack.c.l.s4 1966171168
      %v516 = vunpack.c.0.s8 %v515
      %v517 = vlaneseq
      %v518 = vshrl.u32 %v517, 7
      %v519 = vsub.s32 %v516, %v518
      %v520 = vrot.slane %v513, %v519
      %v522 = vlaneseq
      %vm523 = vcmp.ge.s32.totalorder %v522, 0
      %vm524 = vcmp.lt.s32.totalorder %v522, 512
      %vm525 = vmand %vm523, %vm524
      %526 = vst.msk [vmem:[%s388] sm:$0xf] %vm525, %v520
      %v527 = vadd.f32 %v489, %v490
      %v528 = vadd.f32 %v527, %v491
      %v529 = vadd.f32 %v528, %v492
      %530 = vadd.xlane.f32.xlu0 %v529
      %v531 = vpop.xlane.xlu0 %530
      %v532 = vmul.f32 %v489, %v489
      %v533 = vmul.f32 %v490, %v490
      %v534 = vmul.f32 %v491, %v491
      %v535 = vmul.f32 %v492, %v492
      %v536 = vadd.f32 %v532, %v533
      %v537 = vadd.f32 %v536, %v534
      %v538 = vadd.f32 %v537, %v535
      %539 = vadd.xlane.f32.xlu0 %v538
      %v540 = vpop.xlane.xlu0 %539
      %vm541 = vcmask 7168
      %v542 = vsel %vm541, %v531, %v540
      %vm543 = vcmask 8192
      %544 = vst.msk [vmem:[%s393] sm:$0x1] %vm543, %v542
      %s545 = smul.u32 4, %s27
      %p546 = scmp.lt.s32.totalorder %s26, 1
      %s547 = scalar_select %p546, %s26, 1
      %p548 = scmp.lt.s32.totalorder %s545, 3
      %s549 = scalar_select %p548, %s545, 3
      %s550 = smul.addr %s547, 4
      %s551 = sadd.s32 %s549, %s550
      %s552 = scalar_lea.vmem %s7, %s551
      %s553 = sadd.s32 %s26, %s27
      %p554 = scmp.lt.s32.totalorder %s553, 1
      %s555 = scalar_select %p554, %s553, 1
      %s556 = scalar_lea.vmem %s8, %s555
      // Predicated region
      $region49: #{attention_block_forward.4} parent=47 // pred_check
        %p557 = pneg %p215
      $region50: #{attention_block_forward.4} parent=47 // pred_check_branch
        %559 = sbr.rel (%p557) target = $region52
      $region51: #{attention_block_forward.4} parent=47 // pred_region
        %s560 = smul.u32 4, %s27
      $region52: #{attention_block_forward.4} parent=47 // pred_fallthru
        _
      // Predicated region
      $region53: #{attention_block_forward.4} parent=47 // pred_check
        %p561 = pneg %p243
      $region54: #{attention_block_forward.4} parent=47 // pred_check_branch
        %563 = sbr.rel (%p561) target = $region56
      $region55: #{attention_block_forward.4} parent=47 // pred_region
        %s564 = sadd.s32 %s26, %s27
      $region56: #{attention_block_forward.4} parent=47 // pred_fallthru
        _
    $region48: #{attention_block_forward.4} parent=5 // pred_fallthru
      _
    %p565 = scmp.le.s32.totalorder 2, %s17
    // Predicated region
    $region57: #{attention_block_forward.4} parent=5 // pred_check
      %p566 = pneg %p565
    $region58: #{attention_block_forward.4} parent=5 // pred_check_branch
      %568 = sbr.rel (%p566) target = $region60
    $region59: #{attention_block_forward.4} parent=5 // pred_region
      %s569 = ssub.s32 %s17, 2
      // Predicated region
      $region61: #{attention_block_forward.4} parent=59 // pred_check
        %p570 = pneg %p221
      $region62: #{attention_block_forward.4} parent=59 // pred_check_branch
        %572 = sbr.rel (%p570) target = $region64
      $region63: #{attention_block_forward.4} parent=59 // pred_region
        %s573 = smul.u32 4, %s29
        %p574 = scmp.lt.s32.totalorder %s28, 1
        %s575 = scalar_select %p574, %s28, 1
        %p576 = scmp.lt.s32.totalorder %s573, 3
        %s577 = scalar_select %p576, %s573, 3
        %s578 = smul.addr %s575, 4
        %s579 = sadd.s32 %s577, %s578
        %s580 = scalar_lea.vmem %s7, %s579
      $region64: #{attention_block_forward.4} parent=59 // pred_fallthru
        _
      // Predicated region
      $region65: #{attention_block_forward.4} parent=59 // pred_check
        %p581 = pneg %p249
      $region66: #{attention_block_forward.4} parent=59 // pred_check_branch
        %583 = sbr.rel (%p581) target = $region68
      $region67: #{attention_block_forward.4} parent=59 // pred_region
        %s584 = sadd.s32 %s28, %s29
        %p585 = scmp.lt.s32.totalorder %s584, 1
        %s586 = scalar_select %p585, %s584, 1
        %s587 = scalar_lea.vmem %s8, %s586
      $region68: #{attention_block_forward.4} parent=59 // pred_fallthru
        _
    $region60: #{attention_block_forward.4} parent=5 // pred_fallthru
      _
  $region6: #{attention_block_forward.4} parent=0 // loop_footer
    %s21 = sadd.s32 1, %s17
  $region7: #{attention_block_forward.4} parent=0 // loop_footer_branch
    %16 = sbr.rel target = $region3
  $region8: #{attention_block_forward.4} parent=0 // loop_exit
    _

// kernel: attention_block_forward.3
$region0: #{attention_block_forward.3}
  #allocation0 [shape = 'u32[]', space=smem, size = 0x4, offset = 0x4, fixed_abs, tag = 'smem constant byte address 0x4 - core index']
  #allocation1 [shape = 'u32[144,128]{1,0:T(1,128)}', space=vmem, size = 0x12000, scoped, tag = 'internal scratch']
  %s0 = inlined_call_operand.vmem [shape: bf16[2,16,512], index: 0, kind: input, shape index: {}]
  %s1 = inlined_call_operand.vmem [shape: bf16[2,16,512], index: 1, kind: input, shape index: {}]
  %s2 = inlined_call_operand.vmem [shape: bf16[8,16], index: 2, kind: input, shape index: {}]
  %s3 = inlined_call_operand.vmem [shape: f32[8,1], index: 3, kind: input, shape index: {}]
  %s4 = inlined_call_operand.vmem [shape: bf16[8,16], index: 4, kind: input, shape index: {}]
  %s5 = inlined_call_operand.vmem [shape: f32[8,1], index: 5, kind: input, shape index: {}]
  %s6 = inlined_call_operand.vmem [shape: bf16[2,8,512], index: 6, kind: output, shape index: {0}]
  %s7 = inlined_call_operand.vmem [shape: bf16[2,8,512], index: 7, kind: output, shape index: {1}]
  %s8 = inlined_call_operand.vmem [shape: f32[2,8,4], index: 8, kind: output, shape index: {2}]
  %9 = xla_tuple %s6, %s7, %s8
  %s10 = sld [smem:[#allocation0]]
  $region73: #{attention_block_forward.3} parent=0
    _
  %s12 = ssub.s32 1, %s10
  %s13 = scalar_select 0, %s12, %s10
  loop: start=0, step=1, limit=4
  $region2: #{attention_block_forward.3} parent=0 // loop_pre_header
    _
  $region3: #{attention_block_forward.3} parent=0 // loop_header
    %s15 = sphi 0, %s19
    %p16 = scmp.ge.s32.totalorder %s15, 4
    %s22 = sphi 0, %s34
    %s23 = sphi 0, %s30
    %s24 = sphi 0, %s22
    %s25 = sphi 0, %s23
    %s26 = sphi 0, %s24
    %s27 = sphi 0, %s25
    %s39 = sphi 0, %s41
    %s42 = sphi 0, %s39
    %s43 = sphi 0, %s42
    %s59 = sphi 0, %s43
    %s67 = sphi 0, %s69
    %s70 = sphi 0, %s67
    %s71 = sphi 0, %s70
    %s87 = sphi 0, %s71
    %s91 = sphi 0, %s91
    %s93 = sphi 0, %s91
    %s94 = sphi 0, %s93
    %s108 = sphi 0, %s94
    %s112 = sphi 0, %s112
    %s114 = sphi 0, %s112
    %s115 = sphi 0, %s114
    %s129 = sphi 0, %s115
    %s133 = sphi 0, %s133
    %s135 = sphi 0, %s133
    %s136 = sphi 0, %s135
    %s150 = sphi 0, %s136
    %s154 = sphi 0, %s154
    %s156 = sphi 0, %s154
    %s157 = sphi 0, %s156
    %s171 = sphi 0, %s157
    %s179 = sphi 0, %s181
    %s182 = sphi 0, %s179
    %s183 = sphi 0, %s182
    %s199 = sphi 0, %s183
    %s207 = sphi 0, %s209
    %s210 = sphi 0, %s207
    %s211 = sphi 0, %s210
    %s227 = sphi 0, %s211
    %s235 = sphi 0, %s237
    %s238 = sphi 0, %s235
    %s239 = sphi 0, %s238
    %s255 = sphi 0, %s239
  $region4: #{attention_block_forward.3} parent=0 // loop_header_branch
    %18 = sbr.rel (%p16) target = $region8
  $region5: #{attention_block_forward.3} parent=0 // loop_body
    %s20 = ssub.s32 %s15, 1
    %s21 = ssub.s32 %s15, 2
    %s28 = sadd.s32 1, %s23
    %p29 = scmp.ge.s32.totalorder %s28, 1
    %s30 = scalar_select %p29, 0, %s28
    %s31 = sadd.s32 1, %s22
    %s32 = scalar_select %p29, %s31, %s22
    %p33 = scmp.ge.s32.totalorder %s32, 2
    %s34 = scalar_select %p33, 0, %s32
    %s35 = ssub.s32 %s22, %s34
    %s36 = ssub.s32 %s23, %s30
    %s37 = sor.u32 %s35, %s36
    %p38 = scmp.eq.s32.totalorder %s37, 0
    %s40 = sadd.s32 %s39, 1
    %s41 = scalar_select %p38, %s39, %s40
    %p44 = pneg %p38
    %p45 = scmp.eq.s32.totalorder %s15, 1
    %p46 = por %p44, %p45
    %p47 = scmp.ne.s32.totalorder %s39, %s42
    %p48 = scmp.eq.s32.totalorder %s15, 0
    %p49 = por %p47, %p48
    %p50 = scmp.ne.s32.totalorder %s39, %s42
    %p51 = scmp.eq.s32.totalorder %s20, 1
    %p52 = por %p50, %p51
    %p53 = scmp.ne.s32.totalorder %s42, %s43
    %p54 = scmp.eq.s32.totalorder %s20, 0
    %p55 = por %p53, %p54
    %p56 = scmp.ne.s32.totalorder %s42, %s43
    %p57 = scmp.eq.s32.totalorder %s21, 1
    %p58 = por %p56, %p57
    %p60 = scmp.ne.s32.totalorder %s43, %s59
    %p61 = scmp.eq.s32.totalorder %s21, 0
    %p62 = por %p60, %p61
    %s63 = ssub.s32 %s22, %s34
    %s64 = ssub.s32 %s23, %s30
    %s65 = sor.u32 %s63, %s64
    %p66 = scmp.eq.s32.totalorder %s65, 0
    %s68 = sadd.s32 %s67, 1
    %s69 = scalar_select %p66, %s67, %s68
    %p72 = pneg %p66
    %p73 = scmp.eq.s32.totalorder %s15, 1
    %p74 = por %p72, %p73
    %p75 = scmp.ne.s32.totalorder %s67, %s70
    %p76 = scmp.eq.s32.totalorder %s15, 0
    %p77 = por %p75, %p76
    %p78 = scmp.ne.s32.totalorder %s67, %s70
    %p79 = scmp.eq.s32.totalorder %s20, 1
    %p80 = por %p78, %p79
    %p81 = scmp.ne.s32.totalorder %s70, %s71
    %p82 = scmp.eq.s32.totalorder %s20, 0
    %p83 = por %p81, %p82
    %p84 = scmp.ne.s32.totalorder %s70, %s71
    %p85 = scmp.eq.s32.totalorder %s21, 1
    %p86 = por %p84, %p85
    %p88 = scmp.ne.s32.totalorder %s71, %s87
    %p89 = scmp.eq.s32.totalorder %s21, 0
    %p90 = por %p88, %p89
    %s92 = sadd.s32 %s91, 1
    %p95 = scmp.eq.s32.totalorder %s15, 1
    %p96 = scmp.ne.s32.totalorder %s91, %s93
    %p97 = scmp.eq.s32.totalorder %s15, 0
    %p98 = por %p96, %p97
    %p99 = scmp.ne.s32.totalorder %s91, %s93
    %p100 = scmp.eq.s32.totalorder %s20, 1
    %p101 = por %p99, %p100
    %p102 = scmp.ne.s32.totalorder %s93, %s94
    %p103 = scmp.eq.s32.totalorder %s20, 0
    %p104 = por %p102, %p103
    %p105 = scmp.ne.s32.totalorder %s93, %s94
    %p106 = scmp.eq.s32.totalorder %s21, 1
    %p107 = por %p105, %p106
    %p109 = scmp.ne.s32.totalorder %s94, %s108
    %p110 = scmp.eq.s32.totalorder %s21, 0
    %p111 = por %p109, %p110
    %s113 = sadd.s32 %s112, 1
    %p116 = scmp.eq.s32.totalorder %s15, 1
    %p117 = scmp.ne.s32.totalorder %s112, %s114
    %p118 = scmp.eq.s32.totalorder %s15, 0
    %p119 = por %p117, %p118
    %p120 = scmp.ne.s32.totalorder %s112, %s114
    %p121 = scmp.eq.s32.totalorder %s20, 1
    %p122 = por %p120, %p121
    %p123 = scmp.ne.s32.totalorder %s114, %s115
    %p124 = scmp.eq.s32.totalorder %s20, 0
    %p125 = por %p123, %p124
    %p126 = scmp.ne.s32.totalorder %s114, %s115
    %p127 = scmp.eq.s32.totalorder %s21, 1
    %p128 = por %p126, %p127
    %p130 = scmp.ne.s32.totalorder %s115, %s129
    %p131 = scmp.eq.s32.totalorder %s21, 0
    %p132 = por %p130, %p131
    %s134 = sadd.s32 %s133, 1
    %p137 = scmp.eq.s32.totalorder %s15, 1
    %p138 = scmp.ne.s32.totalorder %s133, %s135
    %p139 = scmp.eq.s32.totalorder %s15, 0
    %p140 = por %p138, %p139
    %p141 = scmp.ne.s32.totalorder %s133, %s135
    %p142 = scmp.eq.s32.totalorder %s20, 1
    %p143 = por %p141, %p142
    %p144 = scmp.ne.s32.totalorder %s135, %s136
    %p145 = scmp.eq.s32.totalorder %s20, 0
    %p146 = por %p144, %p145
    %p147 = scmp.ne.s32.totalorder %s135, %s136
    %p148 = scmp.eq.s32.totalorder %s21, 1
    %p149 = por %p147, %p148
    %p151 = scmp.ne.s32.totalorder %s136, %s150
    %p152 = scmp.eq.s32.totalorder %s21, 0
    %p153 = por %p151, %p152
    %s155 = sadd.s32 %s154, 1
    %p158 = scmp.eq.s32.totalorder %s15, 1
    %p159 = scmp.ne.s32.totalorder %s154, %s156
    %p160 = scmp.eq.s32.totalorder %s15, 0
    %p161 = por %p159, %p160
    %p162 = scmp.ne.s32.totalorder %s154, %s156
    %p163 = scmp.eq.s32.totalorder %s20, 1
    %p164 = por %p162, %p163
    %p165 = scmp.ne.s32.totalorder %s156, %s157
    %p166 = scmp.eq.s32.totalorder %s20, 0
    %p167 = por %p165, %p166
    %p168 = scmp.ne.s32.totalorder %s156, %s157
    %p169 = scmp.eq.s32.totalorder %s21, 1
    %p170 = por %p168, %p169
    %p172 = scmp.ne.s32.totalorder %s157, %s171
    %p173 = scmp.eq.s32.totalorder %s21, 0
    %p174 = por %p172, %p173
    %s175 = ssub.s32 %s22, %s34
    %s176 = ssub.s32 %s23, %s30
    %s177 = sor.u32 %s175, %s176
    %p178 = scmp.eq.s32.totalorder %s177, 0
    %s180 = sadd.s32 %s179, 1
    %s181 = scalar_select %p178, %s179, %s180
    %p184 = pneg %p178
    %p185 = scmp.eq.s32.totalorder %s15, 1
    %p186 = por %p184, %p185
    %p187 = scmp.ne.s32.totalorder %s179, %s182
    %p188 = scmp.eq.s32.totalorder %s15, 0
    %p189 = por %p187, %p188
    %p190 = scmp.ne.s32.totalorder %s179, %s182
    %p191 = scmp.eq.s32.totalorder %s20, 1
    %p192 = por %p190, %p191
    %p193 = scmp.ne.s32.totalorder %s182, %s183
    %p194 = scmp.eq.s32.totalorder %s20, 0
    %p195 = por %p193, %p194
    %p196 = scmp.ne.s32.totalorder %s182, %s183
    %p197 = scmp.eq.s32.totalorder %s21, 1
    %p198 = por %p196, %p197
    %p200 = scmp.ne.s32.totalorder %s183, %s199
    %p201 = scmp.eq.s32.totalorder %s21, 0
    %p202 = por %p200, %p201
    %s203 = ssub.s32 %s22, %s34
    %s204 = ssub.s32 %s23, %s30
    %s205 = sor.u32 %s203, %s204
    %p206 = scmp.eq.s32.totalorder %s205, 0
    %s208 = sadd.s32 %s207, 1
    %s209 = scalar_select %p206, %s207, %s208
    %p212 = pneg %p206
    %p213 = scmp.eq.s32.totalorder %s15, 1
    %p214 = por %p212, %p213
    %p215 = scmp.ne.s32.totalorder %s207, %s210
    %p216 = scmp.eq.s32.totalorder %s15, 0
    %p217 = por %p215, %p216
    %p218 = scmp.ne.s32.totalorder %s207, %s210
    %p219 = scmp.eq.s32.totalorder %s20, 1
    %p220 = por %p218, %p219
    %p221 = scmp.ne.s32.totalorder %s210, %s211
    %p222 = scmp.eq.s32.totalorder %s20, 0
    %p223 = por %p221, %p222
    %p224 = scmp.ne.s32.totalorder %s210, %s211
    %p225 = scmp.eq.s32.totalorder %s21, 1
    %p226 = por %p224, %p225
    %p228 = scmp.ne.s32.totalorder %s211, %s227
    %p229 = scmp.eq.s32.totalorder %s21, 0
    %p230 = por %p228, %p229
    %s231 = sadd.s32 %s22, %s23
    %s232 = sadd.s32 %s34, %s30
    %s233 = ssub.s32 %s231, %s232
    %p234 = scmp.eq.s32.totalorder %s233, 0
    %s236 = sadd.s32 %s235, 1
    %s237 = scalar_select %p234, %s235, %s236
    %p240 = pneg %p234
    %p241 = scmp.eq.s32.totalorder %s15, 1
    %p242 = por %p240, %p241
    %p243 = scmp.ne.s32.totalorder %s235, %s238
    %p244 = scmp.eq.s32.totalorder %s15, 0
    %p245 = por %p243, %p244
    %p246 = scmp.ne.s32.totalorder %s235, %s238
    %p247 = scmp.eq.s32.totalorder %s20, 1
    %p248 = por %p246, %p247
    %p249 = scmp.ne.s32.totalorder %s238, %s239
    %p250 = scmp.eq.s32.totalorder %s20, 0
    %p251 = por %p249, %p250
    %p252 = scmp.ne.s32.totalorder %s238, %s239
    %p253 = scmp.eq.s32.totalorder %s21, 1
    %p254 = por %p252, %p253
    %p256 = scmp.ne.s32.totalorder %s239, %s255
    %p257 = scmp.eq.s32.totalorder %s21, 0
    %p258 = por %p256, %p257
    %p259 = scmp.le.s32.totalorder 1, %s15
    %p260 = scmp.lt.s32.totalorder %s15, 3
    %p261 = pnand %p259, %p260
    %p262 = pneg %p261
    // Predicated region
    $region9: #{attention_block_forward.3} parent=5 // pred_check
      _
    $region10: #{attention_block_forward.3} parent=5 // pred_check_branch
      %264 = sbr.rel (%p261) target = $region12
    $region11: #{attention_block_forward.3} parent=5 // pred_region
      %s265 = ssub.s32 %s15, 1
      // Predicated region
      $region13: #{attention_block_forward.3} parent=11 // pred_check
        %p266 = pneg %p104
      $region14: #{attention_block_forward.3} parent=11 // pred_check_branch
        %268 = sbr.rel (%p266) target = $region16
      $region15: #{attention_block_forward.3} parent=11 // pred_region
        _
      $region16: #{attention_block_forward.3} parent=11 // pred_fallthru
        _
      // Predicated region
      $region17: #{attention_block_forward.3} parent=11 // pred_check
        %p269 = pneg %p125
      $region18: #{attention_block_forward.3} parent=11 // pred_check_branch
        %271 = sbr.rel (%p269) target = $region20
      $region19: #{attention_block_forward.3} parent=11 // pred_region
        _
      $region20: #{attention_block_forward.3} parent=11 // pred_fallthru
        _
      // Predicated region
      $region21: #{attention_block_forward.3} parent=11 // pred_check
        %p272 = pneg %p146
      $region22: #{attention_block_forward.3} parent=11 // pred_check_branch
        %274 = sbr.rel (%p272) target = $region24
      $region23: #{attention_block_forward.3} parent=11 // pred_region
        _
      $region24: #{attention_block_forward.3} parent=11 // pred_fallthru
        _
      // Predicated region
      $region25: #{attention_block_forward.3} parent=11 // pred_check
        %p275 = pneg %p167
      $region26: #{attention_block_forward.3} parent=11 // pred_check_branch
        %277 = sbr.rel (%p275) target = $region28
      $region27: #{attention_block_forward.3} parent=11 // pred_region
        _
      $region28: #{attention_block_forward.3} parent=11 // pred_fallthru
        _
    $region12: #{attention_block_forward.3} parent=5 // pred_fallthru
      _
    %p278 = scmp.lt.s32.totalorder %s15, 2
    // Predicated region
    $region29: #{attention_block_forward.3} parent=5 // pred_check
      %p279 = pneg %p278
    $region30: #{attention_block_forward.3} parent=5 // pred_check_branch
      %281 = sbr.rel (%p279) target = $region32
    $region31: #{attention_block_forward.3} parent=5 // pred_region
      // Predicated region
      $region33: #{attention_block_forward.3} parent=31 // pred_check
        %p282 = pneg %p49
      $region34: #{attention_block_forward.3} parent=31 // pred_check_branch
        %284 = sbr.rel (%p282) target = $region36
      $region35: #{attention_block_forward.3} parent=31 // pred_region
        %s285 = smul.u32 4, %s23
        %p286 = scmp.lt.s32.totalorder %s22, 1
        %s287 = scalar_select %p286, %s22, 1
        %p288 = scmp.lt.s32.totalorder %s285, 3
        %s289 = scalar_select %p288, %s285, 3
        %s290 = smul.addr %s287, 8
        %s291 = sadd.s32 %s289, %s290
        %s292 = smul.addr %s291, 4
        %s293 = scalar_lea.vmem %s0, %s292
        %s294 = smul.u32 4, %s23
      $region36: #{attention_block_forward.3} parent=31 // pred_fallthru
        _
      // Predicated region
      $region37: #{attention_block_forward.3} parent=31 // pred_check
        %p295 = pneg %p77
      $region38: #{attention_block_forward.3} parent=31 // pred_check_branch
        %297 = sbr.rel (%p295) target = $region40
      $region39: #{attention_block_forward.3} parent=31 // pred_region
        %s298 = smul.u32 4, %s23
        %p299 = scmp.lt.s32.totalorder %s22, 1
        %s300 = scalar_select %p299, %s22, 1
        %p301 = scmp.lt.s32.totalorder %s298, 3
        %s302 = scalar_select %p301, %s298, 3
        %s303 = smul.addr %s300, 8
        %s304 = sadd.s32 %s302, %s303
        %s305 = smul.addr %s304, 4
        %s306 = scalar_lea.vmem %s1, %s305
        %s307 = smul.u32 4, %s23
      $region40: #{attention_block_forward.3} parent=31 // pred_fallthru
        _
    $region32: #{attention_block_forward.3} parent=5 // pred_fallthru
      _
    %p308 = scmp.le.s32.totalorder 1, %s15
    %p309 = scmp.lt.s32.totalorder %s15, 3
    %p310 = pnand %p308, %p309
    %p311 = pneg %p310
    // Predicated region
    $region41: #{attention_block_forward.3} parent=5 // pred_check
      _
    $region42: #{attention_block_forward.3} parent=5 // pred_check_branch
      %313 = sbr.rel (%p310) target = $region44
    $region43: #{attention_block_forward.3} parent=5 // pred_region
      %s314 = ssub.s32 %s15, 1
      %s315 = smul.u32 4, %s25
      %p316 = scmp.lt.s32.totalorder %s24, 1
      %s317 = scalar_select %p316, %s24, 1
      %p318 = scmp.lt.s32.totalorder %s315, 3
      %s319 = scalar_select %p318, %s315, 3
      %s320 = smul.addr %s317, 8
      %s321 = sadd.s32 %s319, %s320
      %s322 = smul.addr %s321, 4
      %s323 = scalar_lea.vmem %s0, %s322
      %p324 = pneg %p55
      %p325 = pneg %p52
      %s326 = smul.u32 4, %s25
      %p327 = scmp.lt.s32.totalorder %s24, 1
      %s328 = scalar_select %p327, %s24, 1
      %p329 = scmp.lt.s32.totalorder %s326, 3
      %s330 = scalar_select %p329, %s326, 3
      %s331 = smul.addr %s328, 8
      %s332 = sadd.s32 %s330, %s331
      %s333 = smul.addr %s332, 4
      %s334 = scalar_lea.vmem %s1, %s333
      %p335 = pneg %p83
      %p336 = pneg %p80
      %p337 = pneg %p104
      %p338 = pneg %p101
      %p339 = pneg %p125
      %p340 = pneg %p122
      %p341 = pneg %p146
      %p342 = pneg %p143
      %p343 = pneg %p167
      %p344 = pneg %p164
      %p345 = pneg %p195
      %p346 = pneg %p192
      %s347 = smul.u32 4, %s25
      %p348 = scmp.lt.s32.totalorder %s24, 1
      %s349 = scalar_select %p348, %s24, 1
      %p350 = scmp.lt.s32.totalorder %s347, 3
      %s351 = scalar_select %p350, %s347, 3
      %s352 = smul.addr %s349, 4
      %s353 = sadd.s32 %s351, %s352
      %s354 = smul.addr %s353, 4
      %s355 = scalar_lea.vmem %s6, %s354
      %p356 = pneg %p223
      %p357 = pneg %p220
      %s358 = smul.u32 4, %s25
      %p359 = scmp.lt.s32.totalorder %s24, 1
      %s360 = scalar_select %p359, %s24, 1
      %p361 = scmp.lt.s32.totalorder %s358, 3
      %s362 = scalar_select %p361, %s358, 3
      %s363 = smul.addr %s360, 4
      %s364 = sadd.s32 %s362, %s363
      %s365 = smul.addr %s364, 4
      %s366 = scalar_lea.vmem %s7, %s365
      %p367 = pneg %p251
      %p368 = pneg %p248
      %s369 = sadd.s32 %s24, %s25
      %p370 = scmp.lt.s32.totalorder %s369, 1
      %s371 = scalar_select %p370, %s369, 1
      %s372 = smul.addr %s371, 8
      %s373 = scalar_lea.vmem %s8, %s372
      %s374 = smul.u32 4, %s25
      %p375 = scmp.lt.s32.totalorder %s24, 1
      %s376 = scalar_select %p375, %s24, 1
      %p377 = scmp.lt.s32.totalorder %s374, 3
      %s378 = scalar_select %p377, %s374, 3
      %s379 = smul.addr %s376, 8
      %s380 = sadd.s32 %s378, %s379
      %s381 = smul.addr %s380, 4
      %s382 = scalar_lea.vmem %s0, %s381
      %s383 = smul.u32 4, %s25
      %s384 = smul.u32 4, %s25
      %p385 = scmp.lt.s32.totalorder %s24, 1
      %s386 = scalar_select %p385, %s24, 1
      %p387 = scmp.lt.s32.totalorder %s384, 3
      %s388 = scalar_select %p387, %s384, 3
      %s389 = smul.addr %s386, 8
      %s390 = sadd.s32 %s388, %s389
      %s391 = smul.addr %s390, 4
      %s392 = scalar_lea.vmem %s1, %s391
      %s393 = smul.u32 4, %s25
      %s394 = smul.u32 4, %s25
      %p395 = scmp.lt.s32.totalorder %s24, 1
      %s396 = scalar_select %p395, %s24, 1
      %p397 = scmp.lt.s32.totalorder %s394, 3
      %s398 = scalar_select %p397, %s394, 3
      %s399 = smul.addr %s396, 4
      %s400 = sadd.s32 %s398, %s399
      %s401 = smul.addr %s400, 4
      %s402 = scalar_lea.vmem %s6, %s401
      %s403 = smul.u32 4, %s25
      %s404 = smul.u32 4, %s25
      %p405 = scmp.lt.s32.totalorder %s24, 1
      %s406 = scalar_select %p405, %s24, 1
      %p407 = scmp.lt.s32.totalorder %s404, 3
      %s408 = scalar_select %p407, %s404, 3
      %s409 = smul.addr %s406, 4
      %s410 = sadd.s32 %s408, %s409
      %s411 = smul.addr %s410, 4
      %s412 = scalar_lea.vmem %s7, %s411
      %s413 = smul.u32 4, %s25
      %s414 = sadd.s32 %s24, %s25
      %p415 = scmp.lt.s32.totalorder %s414, 1
      %s416 = scalar_select %p415, %s414, 1
      %s417 = smul.addr %s416, 8
      %s418 = scalar_lea.vmem %s8, %s417
      %s419 = sadd.s32 %s24, %s25
      %v421 = vld [vmem:[%s382] sm:$0xff]
      %v422 = vld [vmem:[%s382 + $0x8] sm:$0xff]
      %v423 = vld [vmem:[%s382 + $0x10] sm:$0xff]
      %v424 = vld [vmem:[%s382 + $0x18] sm:$0xff]
      %v425 = vld [vmem:[%s392] sm:$0xff]
      %v426 = vld [vmem:[%s392 + $0x8] sm:$0xff]
      %v427 = vld [vmem:[%s392 + $0x10] sm:$0xff]
      %v428 = vld [vmem:[%s392 + $0x18] sm:$0xff]
      %v429 = vld [vmem:[%s2] sm:$0xf]
      %v430 = vld [vmem:[%s3] sm:$0xff]
      %432 = vset.pattern.permute.xlu0 0
      %433 = vperm.xlu0 %432, %v430
      %v434 = vpop.permute.xlu0 %433
      %v440 = vunpack.c.l.b16 %v421
      %v441 = vunpack.c.h.b16 %v421
      %v442 = vunpack.c.l.b16 %v422
      %v443 = vunpack.c.h.b16 %v422
      %v444 = vunpack.c.l.b16 %v423
      %v445 = vunpack.c.h.b16 %v423
      %v446 = vunpack.c.l.b16 %v424
      %v447 = vunpack.c.h.b16 %v424
      %v448 = vpack.c.b16 %v444, %v440
      %v449 = vpack.c.b16 %v445, %v441
      %v450 = vpack.c.b16 %v446, %v442
      %v451 = vpack.c.b16 %v447, %v443
      %vm456 = vcmask 130048
      %v458 = vsel %vm456, %v429, 0
      %460 = vmatprep.subr.bf16.mxu0 %v449
      %461 = vmatpush1.bf16.msra.mxu0 %v448
      %462 = vmatprep.subr.bf16.mxu0 0
      %463 = vmatpush1.bf16.msra.mxu0 0
      %464 = vmatprep.subr.bf16.mxu0 0
      %465 = vmatpush1.bf16.msra.mxu0 0
      %466 = vmatprep.subr.bf16.mxu0 0
      %467 = vmatpush1.bf16.msra.mxu0 0
      %468 = vmatprep.subr.bf16.mxu0 0
      %469 = vmatpush1.bf16.msra.mxu0 0
      %470 = vmatprep.subr.bf16.mxu0 0
      %471 = vmatpush1.bf16.msra.mxu0 0
      %472 = vmatprep.subr.bf16.mxu0 0
      %473 = vmatpush1.bf16.msra.mxu0 0
      %474 = vmatprep.subr.bf16.mxu0 0
      %475 = vmatpush1.bf16.msra.mxu0 0
      %476 = vmatprep.subr.bf16.mxu0 0
      %477 = vmatpush1.bf16.msra.mxu0 0
      %478 = vmatprep.subr.bf16.mxu0 0
      %479 = vmatpush1.bf16.msra.mxu0 0
      %480 = vmatprep.subr.bf16.mxu0 0
      %481 = vmatpush1.bf16.msra.mxu0 0
      %482 = vmatprep.subr.bf16.mxu0 0
      %483 = vmatpush1.bf16.msra.mxu0 0
      %484 = vmatprep.subr.bf16.mxu0 0
      %485 = vmatpush1.bf16.msra.mxu0 0
      %486 = vmatprep.subr.bf16.mxu0 0
      %487 = vmatpush1.bf16.msra.mxu0 0
      %488 = vmatprep.subr.bf16.mxu0 0
      %489 = vmatpush1.bf16.msra.mxu0 0
      %490 = vmatprep.subr.bf16.mxu0 0
      %491 = vmatpush1.bf16.msra.mxu0 0
      %492 = vmatprep.mubr.bf16.mxu0 0
      %493 = vmatmul.mubr.bf16.gmra.mrb[0].mxu0 %v458
      %v494 = vpop.f32.mrb[0].mxu0
      %v495 = vadd.f32 %v434, %v494
      %v496 = vpop.f32.mrb[0].mxu0
      %v497 = vadd.f32 %v434, %v496
      %v498 = vpop.f32.mrb[0].mxu0
      %v499 = vpop.f32.mrb[0].mxu0
      %500 = vdwg.mxu0
      %501 = vmatprep.subr.bf16.mxu0 %v451
      %502 = vmatpush1.bf16.msra.mxu0 %v450
      %503 = vmatprep.subr.bf16.mxu0 0
      %504 = vmatpush1.bf16.msra.mxu0 0
      %505 = vmatprep.subr.bf16.mxu0 0
      %506 = vmatpush1.bf16.msra.mxu0 0
      %507 = vmatprep.subr.bf16.mxu0 0
      %508 = vmatpush1.bf16.msra.mxu0 0
      %509 = vmatprep.subr.bf16.mxu0 0
      %510 = vmatpush1.bf16.msra.mxu0 0
      %511 = vmatprep.subr.bf16.mxu0 0
      %512 = vmatpush1.bf16.msra.mxu0 0
      %513 = vmatprep.subr.bf16.mxu0 0
      %514 = vmatpush1.bf16.msra.mxu0 0
      %515 = vmatprep.subr.bf16.mxu0 0
      %516 = vmatpush1.bf16.msra.mxu0 0
      %517 = vmatprep.subr.bf16.mxu0 0
      %518 = vmatpush1.bf16.msra.mxu0 0
      %519 = vmatprep.subr.bf16.mxu0 0
      %520 = vmatpush1.bf16.msra.mxu0 0
      %521 = vmatprep.subr.bf16.mxu0 0
      %522 = vmatpush1.bf16.msra.mxu0 0
      %523 = vmatprep.subr.bf16.mxu0 0
      %524 = vmatpush1.bf16.msra.mxu0 0
      %525 = vmatprep.subr.bf16.mxu0 0
      %526 = vmatpush1.bf16.msra.mxu0 0
      %527 = vmatprep.subr.bf16.mxu0 0
      %528 = vmatpush1.bf16.msra.mxu0 0
      %529 = vmatprep.subr.bf16.mxu0 0
      %530 = vmatpush1.bf16.msra.mxu0 0
      %531 = vmatprep.subr.bf16.mxu0 0
      %532 = vmatpush1.bf16.msra.mxu0 0
      %533 = vmatprep.mubr.bf16.mxu0 0
      %534 = vmatmul.mubr.bf16.gmra.mrb[0].mxu0 %v458
      %v535 = vpop.f32.mrb[0].mxu0
      %v536 = vadd.f32 %v434, %v535
      %v537 = vpop.f32.mrb[0].mxu0
      %v538 = vadd.f32 %v434, %v537
      %v539 = vpop.f32.mrb[0].mxu0
      %v540 = vpop.f32.mrb[0].mxu0
      %541 = vdwg.mxu0
      %v542 = vld [vmem:[%s4] sm:$0xf]
      %v543 = vld [vmem:[%s5] sm:$0xff]
      %545 = vset.pattern.permute.xlu0 0
      %546 = vperm.xlu0 %545, %v543
      %v547 = vpop.permute.xlu0 %546
      %v553 = vunpack.c.l.b16 %v425
      %v554 = vunpack.c.h.b16 %v425
      %v555 = vunpack.c.l.b16 %v426
      %v556 = vunpack.c.h.b16 %v426
      %v557 = vunpack.c.l.b16 %v427
      %v558 = vunpack.c.h.b16 %v427
      %v559 = vunpack.c.l.b16 %v428
      %v560 = vunpack.c.h.b16 %v428
      %v561 = vpack.c.b16 %v557, %v553
      %v562 = vpack.c.b16 %v558, %v554
      %v563 = vpack.c.b16 %v559, %v555
      %v564 = vpack.c.b16 %v560, %v556
      %v570 = vsel %vm456, %v542, 0
      %572 = vmatprep.subr.bf16.mxu0 %v562
      %573 = vmatpush1.bf16.msra.mxu0 %v561
      %574 = vmatprep.subr.bf16.mxu0 0
      %575 = vmatpush1.bf16.msra.mxu0 0
      %576 = vmatprep.subr.bf16.mxu0 0
      %577 = vmatpush1.bf16.msra.mxu0 0
      %578 = vmatprep.subr.bf16.mxu0 0
      %579 = vmatpush1.bf16.msra.mxu0 0
      %580 = vmatprep.subr.bf16.mxu0 0
      %581 = vmatpush1.bf16.msra.mxu0 0
      %582 = vmatprep.subr.bf16.mxu0 0
      %583 = vmatpush1.bf16.msra.mxu0 0
      %584 = vmatprep.subr.bf16.mxu0 0
      %585 = vmatpush1.bf16.msra.mxu0 0
      %586 = vmatprep.subr.bf16.mxu0 0
      %587 = vmatpush1.bf16.msra.mxu0 0
      %588 = vmatprep.subr.bf16.mxu0 0
      %589 = vmatpush1.bf16.msra.mxu0 0
      %590 = vmatprep.subr.bf16.mxu0 0
      %591 = vmatpush1.bf16.msra.mxu0 0
      %592 = vmatprep.subr.bf16.mxu0 0
      %593 = vmatpush1.bf16.msra.mxu0 0
      %594 = vmatprep.subr.bf16.mxu0 0
      %595 = vmatpush1.bf16.msra.mxu0 0
      %596 = vmatprep.subr.bf16.mxu0 0
      %597 = vmatpush1.bf16.msra.mxu0 0
      %598 = vmatprep.subr.bf16.mxu0 0
      %599 = vmatpush1.bf16.msra.mxu0 0
      %600 = vmatprep.subr.bf16.mxu0 0
      %601 = vmatpush1.bf16.msra.mxu0 0
      %602 = vmatprep.subr.bf16.mxu0 0
      %603 = vmatpush1.bf16.msra.mxu0 0
      %604 = vmatprep.mubr.bf16.mxu0 0
      %605 = vmatmul.mubr.bf16.gmra.mrb[0].mxu0 %v570
      %v606 = vpop.f32.mrb[0].mxu0
      %v607 = vadd.f32 %v547, %v606
      %v608 = vpop.f32.mrb[0].mxu0
      %v609 = vadd.f32 %v547, %v608
      %v610 = vpop.f32.mrb[0].mxu0
      %v611 = vpop.f32.mrb[0].mxu0
      %612 = vdwg.mxu0
      %613 = vmatprep.subr.bf16.mxu0 %v564
      %614 = vmatpush1.bf16.msra.mxu0 %v563
      %615 = vmatprep.subr.bf16.mxu0 0
      %616 = vmatpush1.bf16.msra.mxu0 0
      %617 = vmatprep.subr.bf16.mxu0 0
      %618 = vmatpush1.bf16.msra.mxu0 0
      %619 = vmatprep.subr.bf16.mxu0 0
      %620 = vmatpush1.bf16.msra.mxu0 0
      %621 = vmatprep.subr.bf16.mxu0 0
      %622 = vmatpush1.bf16.msra.mxu0 0
      %623 = vmatprep.subr.bf16.mxu0 0
      %624 = vmatpush1.bf16.msra.mxu0 0
      %625 = vmatprep.subr.bf16.mxu0 0
      %626 = vmatpush1.bf16.msra.mxu0 0
      %627 = vmatprep.subr.bf16.mxu0 0
      %628 = vmatpush1.bf16.msra.mxu0 0
      %629 = vmatprep.subr.bf16.mxu0 0
      %630 = vmatpush1.bf16.msra.mxu0 0
      %631 = vmatprep.subr.bf16.mxu0 0
      %632 = vmatpush1.bf16.msra.mxu0 0
      %633 = vmatprep.subr.bf16.mxu0 0
      %634 = vmatpush1.bf16.msra.mxu0 0
      %635 = vmatprep.subr.bf16.mxu0 0
      %636 = vmatpush1.bf16.msra.mxu0 0
      %637 = vmatprep.subr.bf16.mxu0 0
      %638 = vmatpush1.bf16.msra.mxu0 0
      %639 = vmatprep.subr.bf16.mxu0 0
      %640 = vmatpush1.bf16.msra.mxu0 0
      %641 = vmatprep.subr.bf16.mxu0 0
      %642 = vmatpush1.bf16.msra.mxu0 0
      %643 = vmatprep.subr.bf16.mxu0 0
      %644 = vmatpush1.bf16.msra.mxu0 0
      %645 = vmatprep.mubr.bf16.mxu0 0
      %646 = vmatmul.mubr.bf16.gmra.mrb[0].mxu0 %v570
      %v647 = vpop.f32.mrb[0].mxu0
      %v648 = vadd.f32 %v547, %v647
      %v649 = vpop.f32.mrb[0].mxu0
      %v650 = vadd.f32 %v547, %v649
      %v651 = vpop.f32.mrb[0].mxu0
      %v652 = vpop.f32.mrb[0].mxu0
      %653 = vdwg.mxu0
      %v654 = vpack.c.bf16 %v495, %v495
      %v655 = vpack.c.bf16 %v497, %v497
      %v656 = vpack.c.bf16 %v536, %v536
      %v657 = vpack.c.bf16 %v538, %v538
      %v662 = vunpack.c.l.b16 %v654
      %v663 = vunpack.c.l.b16 %v655
      %v664 = vunpack.c.l.b16 %v656
      %v665 = vunpack.c.l.b16 %v657
      %v666 = vpack.c.b16 %v663, %v662
      %v667 = vpack.c.b16 %v665, %v664
      %670 = vst [vmem:[%s402] sm:$0xff] %v666
      %671 = vst [vmem:[%s402 + $0x8] sm:$0xff] %v667
      %v672 = vpack.c.bf16 %v607, %v607
      %v673 = vpack.c.bf16 %v609, %v609
      %v674 = vpack.c.bf16 %v648, %v648
      %v675 = vpack.c.bf16 %v650, %v650
      %v680 = vunpack.c.l.b16 %v672
      %v681 = vunpack.c.l.b16 %v673
      %v682 = vunpack.c.l.b16 %v674
      %v683 = vunpack.c.l.b16 %v675
      %v684 = vpack.c.b16 %v681, %v680
      %v685 = vpack.c.b16 %v683, %v682
      %688 = vst [vmem:[%s412] sm:$0xff] %v684
      %689 = vst [vmem:[%s412 + $0x8] sm:$0xff] %v685
      %v690 = vadd.f32 %v495, %v497
      %v691 = vadd.f32 %v690, %v536
      %v692 = vadd.f32 %v691, %v538
      %693 = vadd.xlane.f32.xlu0 %v692
      %v694 = vpop.xlane.xlu0 %693
      %v695 = vmul.f32 %v495, %v495
      %v696 = vmul.f32 %v497, %v497
      %v697 = vmul.f32 %v536, %v536
      %v698 = vmul.f32 %v538, %v538
      %v699 = vadd.f32 %v695, %v696
      %v700 = vadd.f32 %v699, %v697
      %v701 = vadd.f32 %v700, %v698
      %702 = vadd.xlane.f32.xlu0 %v701
      %v703 = vpop.xlane.xlu0 %702
      %v704 = vadd.f32 %v607, %v609
      %v705 = vadd.f32 %v704, %v648
      %v706 = vadd.f32 %v705, %v650
      %707 = vadd.xlane.f32.xlu0 %v706
      %v708 = vpop.xlane.xlu0 %707
      %v709 = vmul.f32 %v607, %v607
      %v710 = vmul.f32 %v609, %v609
      %v711 = vmul.f32 %v648, %v648
      %v712 = vmul.f32 %v650, %v650
      %v713 = vadd.f32 %v709, %v710
      %v714 = vadd.f32 %v713, %v711
      %v715 = vadd.f32 %v714, %v712
      %716 = vadd.xlane.f32.xlu0 %v715
      %v717 = vpop.xlane.xlu0 %716
      %vm718 = vcmask 7168
      %v719 = vsel %vm718, %v694, %v703
      %vm720 = vcmask 15360
      %v721 = vsel %vm720, %v719, %v708
      %vm722 = vcmask 23552
      %v723 = vsel %vm722, %v721, %v717
      %vm724 = vcmask 31744
      %725 = vst.msk [vmem:[%s418] sm:$0xff] %vm724, %v723
      %s726 = smul.u32 4, %s25
      %p727 = scmp.lt.s32.totalorder %s24, 1
      %s728 = scalar_select %p727, %s24, 1
      %p729 = scmp.lt.s32.totalorder %s726, 3
      %s730 = scalar_select %p729, %s726, 3
      %s731 = smul.addr %s728, 4
      %s732 = sadd.s32 %s730, %s731
      %s733 = smul.addr %s732, 4
      %s734 = scalar_lea.vmem %s6, %s733
      %s735 = smul.u32 4, %s25
      %p736 = scmp.lt.s32.totalorder %s24, 1
      %s737 = scalar_select %p736, %s24, 1
      %p738 = scmp.lt.s32.totalorder %s735, 3
      %s739 = scalar_select %p738, %s735, 3
      %s740 = smul.addr %s737, 4
      %s741 = sadd.s32 %s739, %s740
      %s742 = smul.addr %s741, 4
      %s743 = scalar_lea.vmem %s7, %s742
      %s744 = sadd.s32 %s24, %s25
      %p745 = scmp.lt.s32.totalorder %s744, 1
      %s746 = scalar_select %p745, %s744, 1
      %s747 = smul.addr %s746, 8
      %s748 = scalar_lea.vmem %s8, %s747
      // Predicated region
      $region45: #{attention_block_forward.3} parent=43 // pred_check
        %p749 = pneg %p192
      $region46: #{attention_block_forward.3} parent=43 // pred_check_branch
        %751 = sbr.rel (%p749) target = $region48
      $region47: #{attention_block_forward.3} parent=43 // pred_region
        %s752 = smul.u32 4, %s25
      $region48: #{attention_block_forward.3} parent=43 // pred_fallthru
        _
      // Predicated region
      $region49: #{attention_block_forward.3} parent=43 // pred_check
        %p753 = pneg %p220
      $region50: #{attention_block_forward.3} parent=43 // pred_check_branch
        %755 = sbr.rel (%p753) target = $region52
      $region51: #{attention_block_forward.3} parent=43 // pred_region
        %s756 = smul.u32 4, %s25
      $region52: #{attention_block_forward.3} parent=43 // pred_fallthru
        _
      // Predicated region
      $region53: #{attention_block_forward.3} parent=43 // pred_check
        %p757 = pneg %p248
      $region54: #{attention_block_forward.3} parent=43 // pred_check_branch
        %759 = sbr.rel (%p757) target = $region56
      $region55: #{attention_block_forward.3} parent=43 // pred_region
        %s760 = sadd.s32 %s24, %s25
      $region56: #{attention_block_forward.3} parent=43 // pred_fallthru
        _
    $region44: #{attention_block_forward.3} parent=5 // pred_fallthru
      _
    %p761 = scmp.le.s32.totalorder 2, %s15
    // Predicated region
    $region57: #{attention_block_forward.3} parent=5 // pred_check
      %p762 = pneg %p761
    $region58: #{attention_block_forward.3} parent=5 // pred_check_branch
      %764 = sbr.rel (%p762) target = $region60
    $region59: #{attention_block_forward.3} parent=5 // pred_region
      %s765 = ssub.s32 %s15, 2
      // Predicated region
      $region61: #{attention_block_forward.3} parent=59 // pred_check
        %p766 = pneg %p198
      $region62: #{attention_block_forward.3} parent=59 // pred_check_branch
        %768 = sbr.rel (%p766) target = $region64
      $region63: #{attention_block_forward.3} parent=59 // pred_region
        %s769 = smul.u32 4, %s27
        %p770 = scmp.lt.s32.totalorder %s26, 1
        %s771 = scalar_select %p770, %s26, 1
        %p772 = scmp.lt.s32.totalorder %s769, 3
        %s773 = scalar_select %p772, %s769, 3
        %s774 = smul.addr %s771, 4
        %s775 = sadd.s32 %s773, %s774
        %s776 = smul.addr %s775, 4
        %s777 = scalar_lea.vmem %s6, %s776
      $region64: #{attention_block_forward.3} parent=59 // pred_fallthru
        _
      // Predicated region
      $region65: #{attention_block_forward.3} parent=59 // pred_check
        %p778 = pneg %p226
      $region66: #{attention_block_forward.3} parent=59 // pred_check_branch
        %780 = sbr.rel (%p778) target = $region68
      $region67: #{attention_block_forward.3} parent=59 // pred_region
        %s781 = smul.u32 4, %s27
        %p782 = scmp.lt.s32.totalorder %s26, 1
        %s783 = scalar_select %p782, %s26, 1
        %p784 = scmp.lt.s32.totalorder %s781, 3
        %s785 = scalar_select %p784, %s781, 3
        %s786 = smul.addr %s783, 4
        %s787 = sadd.s32 %s785, %s786
        %s788 = smul.addr %s787, 4
        %s789 = scalar_lea.vmem %s7, %s788
      $region68: #{attention_block_forward.3} parent=59 // pred_fallthru
        _
      // Predicated region
      $region69: #{attention_block_forward.3} parent=59 // pred_check
        %p790 = pneg %p254
      $region70: #{attention_block_forward.3} parent=59 // pred_check_branch
        %792 = sbr.rel (%p790) target = $region72
      $region71: #{attention_block_forward.3} parent=59 // pred_region
        %s793 = sadd.s32 %s26, %s27
        %p794 = scmp.lt.s32.totalorder %s793, 1
        %s795 = scalar_select %p794, %s793, 1
        %s796 = smul.addr %s795, 8
        %s797 = scalar_lea.vmem %s8, %s796
      $region72: #{attention_block_forward.3} parent=59 // pred_fallthru
        _
    $region60: #{attention_block_forward.3} parent=5 // pred_fallthru
      _
  $region6: #{attention_block_forward.3} parent=0 // loop_footer
    %s19 = sadd.s32 1, %s15
  $region7: #{attention_block_forward.3} parent=0 // loop_footer_branch
    %14 = sbr.rel target = $region3
  $region8: #{attention_block_forward.3} parent=0 // loop_exit
    _

// kernel: attention_block_forward.5
$region0: #{attention_block_forward.5}
  #allocation0 [shape = 'u32[]', space=smem, size = 0x4, offset = 0x4, fixed_abs, tag = 'smem constant byte address 0x4 - core index']
  #allocation1 [shape = 'u32[144,128]{1,0:T(1,128)}', space=vmem, size = 0x12000, scoped, tag = 'internal scratch']
  %s0 = inlined_call_operand.vmem [shape: f32[2,16,512], index: 0, kind: input, shape index: {}]
  %s1 = inlined_call_operand.vmem [shape: f32[2,1,512], index: 1, kind: input, shape index: {}]
  %s2 = inlined_call_operand.vmem [shape: f32[1,2], index: 2, kind: input, shape index: {}]
  %s3 = inlined_call_operand.vmem [shape: f32[2,16,512], index: 3, kind: output, shape index: {}]
  %s4 = sld [smem:[#allocation0]]
  $region45: #{attention_block_forward.5} parent=0
    _
  %s6 = ssub.s32 1, %s4
  %s7 = scalar_select 0, %s6, %s4
  loop: start=0, step=1, limit=4
  $region2: #{attention_block_forward.5} parent=0 // loop_pre_header
    _
  $region3: #{attention_block_forward.5} parent=0 // loop_header
    %s9 = sphi 0, %s13
    %p10 = scmp.ge.s32.totalorder %s9, 4
    %s16 = sphi 0, %s28
    %s17 = sphi 0, %s24
    %s18 = sphi 0, %s16
    %s19 = sphi 0, %s17
    %s20 = sphi 0, %s18
    %s21 = sphi 0, %s19
    %s33 = sphi 0, %s35
    %s36 = sphi 0, %s33
    %s37 = sphi 0, %s36
    %s53 = sphi 0, %s37
    %s61 = sphi 0, %s63
    %s64 = sphi 0, %s61
    %s65 = sphi 0, %s64
    %s81 = sphi 0, %s65
    %s85 = sphi 0, %s85
    %s87 = sphi 0, %s85
    %s88 = sphi 0, %s87
    %s102 = sphi 0, %s88
    %s110 = sphi 0, %s112
    %s113 = sphi 0, %s110
    %s114 = sphi 0, %s113
    %s130 = sphi 0, %s114
  $region4: #{attention_block_forward.5} parent=0 // loop_header_branch
    %12 = sbr.rel (%p10) target = $region8
  $region5: #{attention_block_forward.5} parent=0 // loop_body
    %s14 = ssub.s32 %s9, 1
    %s15 = ssub.s32 %s9, 2
    %s22 = sadd.s32 1, %s17
    %p23 = scmp.ge.s32.totalorder %s22, 1
    %s24 = scalar_select %p23, 0, %s22
    %s25 = sadd.s32 1, %s16
    %s26 = scalar_select %p23, %s25, %s16
    %p27 = scmp.ge.s32.totalorder %s26, 2
    %s28 = scalar_select %p27, 0, %s26
    %s29 = ssub.s32 %s16, %s28
    %s30 = ssub.s32 %s17, %s24
    %s31 = sor.u32 %s29, %s30
    %p32 = scmp.eq.s32.totalorder %s31, 0
    %s34 = sadd.s32 %s33, 1
    %s35 = scalar_select %p32, %s33, %s34
    %p38 = pneg %p32
    %p39 = scmp.eq.s32.totalorder %s9, 1
    %p40 = por %p38, %p39
    %p41 = scmp.ne.s32.totalorder %s33, %s36
    %p42 = scmp.eq.s32.totalorder %s9, 0
    %p43 = por %p41, %p42
    %p44 = scmp.ne.s32.totalorder %s33, %s36
    %p45 = scmp.eq.s32.totalorder %s14, 1
    %p46 = por %p44, %p45
    %p47 = scmp.ne.s32.totalorder %s36, %s37
    %p48 = scmp.eq.s32.totalorder %s14, 0
    %p49 = por %p47, %p48
    %p50 = scmp.ne.s32.totalorder %s36, %s37
    %p51 = scmp.eq.s32.totalorder %s15, 1
    %p52 = por %p50, %p51
    %p54 = scmp.ne.s32.totalorder %s37, %s53
    %p55 = scmp.eq.s32.totalorder %s15, 0
    %p56 = por %p54, %p55
    %s57 = ssub.s32 %s16, %s28
    %s58 = ssub.s32 %s17, %s24
    %s59 = sor.u32 %s57, %s58
    %p60 = scmp.eq.s32.totalorder %s59, 0
    %s62 = sadd.s32 %s61, 1
    %s63 = scalar_select %p60, %s61, %s62
    %p66 = pneg %p60
    %p67 = scmp.eq.s32.totalorder %s9, 1
    %p68 = por %p66, %p67
    %p69 = scmp.ne.s32.totalorder %s61, %s64
    %p70 = scmp.eq.s32.totalorder %s9, 0
    %p71 = por %p69, %p70
    %p72 = scmp.ne.s32.totalorder %s61, %s64
    %p73 = scmp.eq.s32.totalorder %s14, 1
    %p74 = por %p72, %p73
    %p75 = scmp.ne.s32.totalorder %s64, %s65
    %p76 = scmp.eq.s32.totalorder %s14, 0
    %p77 = por %p75, %p76
    %p78 = scmp.ne.s32.totalorder %s64, %s65
    %p79 = scmp.eq.s32.totalorder %s15, 1
    %p80 = por %p78, %p79
    %p82 = scmp.ne.s32.totalorder %s65, %s81
    %p83 = scmp.eq.s32.totalorder %s15, 0
    %p84 = por %p82, %p83
    %s86 = sadd.s32 %s85, 1
    %p89 = scmp.eq.s32.totalorder %s9, 1
    %p90 = scmp.ne.s32.totalorder %s85, %s87
    %p91 = scmp.eq.s32.totalorder %s9, 0
    %p92 = por %p90, %p91
    %p93 = scmp.ne.s32.totalorder %s85, %s87
    %p94 = scmp.eq.s32.totalorder %s14, 1
    %p95 = por %p93, %p94
    %p96 = scmp.ne.s32.totalorder %s87, %s88
    %p97 = scmp.eq.s32.totalorder %s14, 0
    %p98 = por %p96, %p97
    %p99 = scmp.ne.s32.totalorder %s87, %s88
    %p100 = scmp.eq.s32.totalorder %s15, 1
    %p101 = por %p99, %p100
    %p103 = scmp.ne.s32.totalorder %s88, %s102
    %p104 = scmp.eq.s32.totalorder %s15, 0
    %p105 = por %p103, %p104
    %s106 = ssub.s32 %s16, %s28
    %s107 = ssub.s32 %s17, %s24
    %s108 = sor.u32 %s106, %s107
    %p109 = scmp.eq.s32.totalorder %s108, 0
    %s111 = sadd.s32 %s110, 1
    %s112 = scalar_select %p109, %s110, %s111
    %p115 = pneg %p109
    %p116 = scmp.eq.s32.totalorder %s9, 1
    %p117 = por %p115, %p116
    %p118 = scmp.ne.s32.totalorder %s110, %s113
    %p119 = scmp.eq.s32.totalorder %s9, 0
    %p120 = por %p118, %p119
    %p121 = scmp.ne.s32.totalorder %s110, %s113
    %p122 = scmp.eq.s32.totalorder %s14, 1
    %p123 = por %p121, %p122
    %p124 = scmp.ne.s32.totalorder %s113, %s114
    %p125 = scmp.eq.s32.totalorder %s14, 0
    %p126 = por %p124, %p125
    %p127 = scmp.ne.s32.totalorder %s113, %s114
    %p128 = scmp.eq.s32.totalorder %s15, 1
    %p129 = por %p127, %p128
    %p131 = scmp.ne.s32.totalorder %s114, %s130
    %p132 = scmp.eq.s32.totalorder %s15, 0
    %p133 = por %p131, %p132
    %p134 = scmp.le.s32.totalorder 1, %s9
    %p135 = scmp.lt.s32.totalorder %s9, 3
    %p136 = pnand %p134, %p135
    %p137 = pneg %p136
    // Predicated region
    $region9: #{attention_block_forward.5} parent=5 // pred_check
      _
    $region10: #{attention_block_forward.5} parent=5 // pred_check_branch
      %139 = sbr.rel (%p136) target = $region12
    $region11: #{attention_block_forward.5} parent=5 // pred_region
      %s140 = ssub.s32 %s9, 1
      // Predicated region
      $region13: #{attention_block_forward.5} parent=11 // pred_check
        %p141 = pneg %p98
      $region14: #{attention_block_forward.5} parent=11 // pred_check_branch
        %143 = sbr.rel (%p141) target = $region16
      $region15: #{attention_block_forward.5} parent=11 // pred_region
        _
      $region16: #{attention_block_forward.5} parent=11 // pred_fallthru
        _
    $region12: #{attention_block_forward.5} parent=5 // pred_fallthru
      _
    %p144 = scmp.lt.s32.totalorder %s9, 2
    // Predicated region
    $region17: #{attention_block_forward.5} parent=5 // pred_check
      %p145 = pneg %p144
    $region18: #{attention_block_forward.5} parent=5 // pred_check_branch
      %147 = sbr.rel (%p145) target = $region20
    $region19: #{attention_block_forward.5} parent=5 // pred_region
      // Predicated region
      $region21: #{attention_block_forward.5} parent=19 // pred_check
        %p148 = pneg %p43
      $region22: #{attention_block_forward.5} parent=19 // pred_check_branch
        %150 = sbr.rel (%p148) target = $region24
      $region23: #{attention_block_forward.5} parent=19 // pred_region
        %s151 = smul.u32 4, %s17
        %p152 = scmp.lt.s32.totalorder %s16, 1
        %s153 = scalar_select %p152, %s16, 1
        %p154 = scmp.lt.s32.totalorder %s151, 3
        %s155 = scalar_select %p154, %s151, 3
        %s156 = smul.addr %s153, 8
        %s157 = sadd.s32 %s155, %s156
        %s158 = smul.addr %s157, 8
        %s159 = scalar_lea.vmem %s0, %s158
        %s160 = smul.u32 4, %s17
      $region24: #{attention_block_forward.5} parent=19 // pred_fallthru
        _
      // Predicated region
      $region25: #{attention_block_forward.5} parent=19 // pred_check
        %p161 = pneg %p71
      $region26: #{attention_block_forward.5} parent=19 // pred_check_branch
        %163 = sbr.rel (%p161) target = $region28
      $region27: #{attention_block_forward.5} parent=19 // pred_region
        %s164 = smul.u32 4, %s17
        %p165 = scmp.lt.s32.totalorder %s16, 1
        %s166 = scalar_select %p165, %s16, 1
        %p167 = scmp.lt.s32.totalorder %s164, 3
        %s168 = scalar_select %p167, %s164, 3
        %s169 = smul.addr %s166, 4
        %s170 = sadd.s32 %s168, %s169
        %s171 = scalar_lea.vmem %s1, %s170
        %s172 = smul.u32 4, %s17
      $region28: #{attention_block_forward.5} parent=19 // pred_fallthru
        _
    $region20: #{attention_block_forward.5} parent=5 // pred_fallthru
      _
    %p173 = scmp.le.s32.totalorder 1, %s9
    %p174 = scmp.lt.s32.totalorder %s9, 3
    %p175 = pnand %p173, %p174
    %p176 = pneg %p175
    // Predicated region
    $region29: #{attention_block_forward.5} parent=5 // pred_check
      _
    $region30: #{attention_block_forward.5} parent=5 // pred_check_branch
      %178 = sbr.rel (%p175) target = $region32
    $region31: #{attention_block_forward.5} parent=5 // pred_region
      %s179 = ssub.s32 %s9, 1
      %s180 = smul.u32 4, %s19
      %p181 = scmp.lt.s32.totalorder %s18, 1
      %s182 = scalar_select %p181, %s18, 1
      %p183 = scmp.lt.s32.totalorder %s180, 3
      %s184 = scalar_select %p183, %s180, 3
      %s185 = smul.addr %s182, 8
      %s186 = sadd.s32 %s184, %s185
      %s187 = smul.addr %s186, 8
      %s188 = scalar_lea.vmem %s0, %s187
      %p189 = pneg %p49
      %p190 = pneg %p46
      %s191 = smul.u32 4, %s19
      %p192 = scmp.lt.s32.totalorder %s18, 1
      %s193 = scalar_select %p192, %s18, 1
      %p194 = scmp.lt.s32.totalorder %s191, 3
      %s195 = scalar_select %p194, %s191, 3
      %s196 = smul.addr %s193, 4
      %s197 = sadd.s32 %s195, %s196
      %s198 = scalar_lea.vmem %s1, %s197
      %p199 = pneg %p77
      %p200 = pneg %p74
      %p201 = pneg %p98
      %p202 = pneg %p95
      %p203 = pneg %p126
      %p204 = pneg %p123
      %s205 = smul.u32 4, %s19
      %p206 = scmp.lt.s32.totalorder %s18, 1
      %s207 = scalar_select %p206, %s18, 1
      %p208 = scmp.lt.s32.totalorder %s205, 3
      %s209 = scalar_select %p208, %s205, 3
      %s210 = smul.addr %s207, 8
      %s211 = sadd.s32 %s209, %s210
      %s212 = smul.addr %s211, 8
      %s213 = scalar_lea.vmem %s3, %s212
      %s214 = smul.u32 4, %s19
      %p215 = scmp.lt.s32.totalorder %s18, 1
      %s216 = scalar_select %p215, %s18, 1
      %p217 = scmp.lt.s32.totalorder %s214, 3
      %s218 = scalar_select %p217, %s214, 3
      %s219 = smul.addr %s216, 8
      %s220 = sadd.s32 %s218, %s219
      %s221 = smul.addr %s220, 8
      %s222 = scalar_lea.vmem %s0, %s221
      %s223 = smul.u32 4, %s19
      %s224 = smul.u32 4, %s19
      %p225 = scmp.lt.s32.totalorder %s18, 1
      %s226 = scalar_select %p225, %s18, 1
      %p227 = scmp.lt.s32.totalorder %s224, 3
      %s228 = scalar_select %p227, %s224, 3
      %s229 = smul.addr %s226, 4
      %s230 = sadd.s32 %s228, %s229
      %s231 = scalar_lea.vmem %s1, %s230
      %s232 = smul.u32 4, %s19
      %s233 = smul.u32 4, %s19
      %p234 = scmp.lt.s32.totalorder %s18, 1
      %s235 = scalar_select %p234, %s18, 1
      %p236 = scmp.lt.s32.totalorder %s233, 3
      %s237 = scalar_select %p236, %s233, 3
      %s238 = smul.addr %s235, 8
      %s239 = sadd.s32 %s237, %s238
      %s240 = smul.addr %s239, 8
      %s241 = scalar_lea.vmem %s3, %s240
      %s242 = smul.u32 4, %s19
      %v243 = vld [vmem:[%s231] sm:$0xf]
      %v244 = vld [vmem:[%s2] sm:$0x1]
      %246 = vset.pattern.permute.xlu0 0
      %247 = vperm.xlu0 %246, %v244
      %v248 = vpop.permute.xlu0 %247
      %v250 = vlaneseq
      %v251 = vshrl.u32 %v250, 7
      %v252 = vsub.s32 0, %v251
      %v253 = vrot.slane %v248, %v252
      %v254 = vmul.f32 %v243, %v253
      %255 = vset.pattern.permute.xlu0 1
      %256 = vperm.xlu0 %255, %v244
      %v257 = vpop.permute.xlu0 %256
      %v259 = vlaneseq
      %v260 = vshrl.u32 %v259, 7
      %v261 = vsub.s32 0, %v260
      %v262 = vrot.slane %v257, %v261
      %v263 = vadd.f32 %v254, %v262
      %v264 = vxor.u32 %v263, 2147483648
      %v265 = vmul.f32 %v264, 1.442695
      %v266 = vpow.pop %v265
      %v267 = vadd.f32 %v266, 1.0
      %v268 = vrcp.pop %v267
      %v269 = vmul.f32 1.0, %v268
      %v270 = vld [vmem:[%s222] sm:$0xff]
      %v271 = vld [vmem:[%s222 + $0x8] sm:$0xff]
      %v272 = vld [vmem:[%s222 + $0x10] sm:$0xff]
      %v273 = vld [vmem:[%s222 + $0x18] sm:$0xff]
      %v274 = vld [vmem:[%s222 + $0x20] sm:$0xff]
      %v275 = vld [vmem:[%s222 + $0x28] sm:$0xff]
      %v276 = vld [vmem:[%s222 + $0x30] sm:$0xff]
      %v277 = vld [vmem:[%s222 + $0x38] sm:$0xff]
      %v279 = vlaneseq
      %v280 = vshrl.u32 %v279, 7
      %v281 = vsub.s32 0, %v280
      %v282 = vrot.slane %v269, %v281
      %v283 = vlaneseq
      %v284 = vshrl.u32 %v283, 7
      %v285 = vsub.s32 1, %v284
      %v286 = vrot.slane %v269, %v285
      %v287 = vlaneseq
      %v288 = vshrl.u32 %v287, 7
      %v289 = vsub.s32 2, %v288
      %v290 = vrot.slane %v269, %v289
      %v291 = vlaneseq
      %v292 = vshrl.u32 %v291, 7
      %v293 = vsub.s32 3, %v292
      %v294 = vrot.slane %v269, %v293
      %v299 = vmul.f32 %v270, %v282
      %v300 = vmul.f32 %v271, %v286
      %v301 = vmul.f32 %v272, %v290
      %v302 = vmul.f32 %v273, %v294
      %v303 = vmul.f32 %v274, %v282
      %v304 = vmul.f32 %v275, %v286
      %v305 = vmul.f32 %v276, %v290
      %v306 = vmul.f32 %v277, %v294
      %307 = vst [vmem:[%s241] sm:$0xff] %v299
      %308 = vst [vmem:[%s241 + $0x8] sm:$0xff] %v300
      %309 = vst [vmem:[%s241 + $0x10] sm:$0xff] %v301
      %310 = vst [vmem:[%s241 + $0x18] sm:$0xff] %v302
      %311 = vst [vmem:[%s241 + $0x20] sm:$0xff] %v303
      %312 = vst [vmem:[%s241 + $0x28] sm:$0xff] %v304
      %313 = vst [vmem:[%s241 + $0x30] sm:$0xff] %v305
      %314 = vst [vmem:[%s241 + $0x38] sm:$0xff] %v306
      %s315 = smul.u32 4, %s19
      %p316 = scmp.lt.s32.totalorder %s18, 1
      %s317 = scalar_select %p316, %s18, 1
      %p318 = scmp.lt.s32.totalorder %s315, 3
      %s319 = scalar_select %p318, %s315, 3
      %s320 = smul.addr %s317, 8
      %s321 = sadd.s32 %s319, %s320
      %s322 = smul.addr %s321, 8
      %s323 = scalar_lea.vmem %s3, %s322
      // Predicated region
      $region33: #{attention_block_forward.5} parent=31 // pred_check
        %p324 = pneg %p123
      $region34: #{attention_block_forward.5} parent=31 // pred_check_branch
        %326 = sbr.rel (%p324) target = $region36
      $region35: #{attention_block_forward.5} parent=31 // pred_region
        %s327 = smul.u32 4, %s19
      $region36: #{attention_block_forward.5} parent=31 // pred_fallthru
        _
    $region32: #{attention_block_forward.5} parent=5 // pred_fallthru
      _
    %p328 = scmp.le.s32.totalorder 2, %s9
    // Predicated region
    $region37: #{attention_block_forward.5} parent=5 // pred_check
      %p329 = pneg %p328
    $region38: #{attention_block_forward.5} parent=5 // pred_check_branch
      %331 = sbr.rel (%p329) target = $region40
    $region39: #{attention_block_forward.5} parent=5 // pred_region
      %s332 = ssub.s32 %s9, 2
      // Predicated region
      $region41: #{attention_block_forward.5} parent=39 // pred_check
        %p333 = pneg %p129
      $region42: #{attention_block_forward.5} parent=39 // pred_check_branch
        %335 = sbr.rel (%p333) target = $region44
      $region43: #{attention_block_forward.5} parent=39 // pred_region
        %s336 = smul.u32 4, %s21
        %p337 = scmp.lt.s32.totalorder %s20, 1
        %s338 = scalar_select %p337, %s20, 1
        %p339 = scmp.lt.s32.totalorder %s336, 3
        %s340 = scalar_select %p339, %s336, 3
        %s341 = smul.addr %s338, 8
        %s342 = sadd.s32 %s340, %s341
        %s343 = smul.addr %s342, 8
        %s344 = scalar_lea.vmem %s3, %s343
      $region44: #{attention_block_forward.5} parent=39 // pred_fallthru
        _
    $region40: #{attention_block_forward.5} parent=5 // pred_fallthru
      _
  $region6: #{attention_block_forward.5} parent=0 // loop_footer
    %s13 = sadd.s32 1, %s9
  $region7: #{attention_block_forward.5} parent=0 // loop_footer_branch
    %8 = sbr.rel target = $region3
  $region8: #{attention_block_forward.5} parent=0 // loop_exit
    _

</llo_original>
